<compile_context>
chip_gen: v6e
topology: v6e:2x2x1
jax: 0.10.0
libtpu: 0.0.40
codegen_flags: <defaults>
</compile_context>

<pallas_src>
import functools

import jax
import jax.numpy as jnp
from jax.experimental import pallas as pl
from jax.experimental.pallas import tpu as pltpu


K_BASIS = 5   # spline kernel_size
F1 = 32       # conv1 out channels
F2 = 64       # conv2 out channels


# ----------------------------- Pallas kernel ----------------------------------

def _fused_spline_cnn_kernel(a_ref, x_ref, xr_ref, w1rep_ref, w1r_ref, b1_ref,
                             w2s_ref, w2r_ref, b2_ref, o_ref, xw2_scr,
                             *, k_basis, n, f1, f2):
    """conv1(+ELU) -> conv2 -> log_softmax, fully fused, no grid, all data in VMEM.

    a_ref     : (N, K*N)   bf16  lane-concatenated [A_0 | ... | A_{K-1}] adjacency
    x_ref     : (N, 1)     f32   node features (Fin = 1)
    xr_ref    : (K*N, 1)   f32   x tiled K times along rows
    w1rep_ref : (K*N, F1)  f32   conv1 spline weights, each w1[k] repeated N times
    w1r_ref   : (1, F1)    f32   conv1 root-weight row
    b1_ref    : (1, F1)    f32   conv1 bias
    w2s_ref   : (K*F1, F2) bf16  conv2 spline weights, W2_k stacked along rows
    w2r_ref   : (F1, F2)   f32   conv2 root weight
    b2_ref    : (1, F2)    f32   conv2 bias
    o_ref     : (N, F2)    f32   log_softmax output
    xw2_scr   : (K*N, F2)  bf16  VMEM scratch: stacked conv2 spline operand
    """
    x = x_ref[...]                                           # (N, 1) f32

    # ---- conv1 (Fin = 1) -----------------------------------------------------
    # root + bias: rank-1 VPU broadcast (no matmul needed for Fin=1)
    h1 = x * w1r_ref[...] + b1_ref[...]                      # (N, F1) f32
    # spline term: stacked operand is a pure VPU broadcast multiply, then ONE deep
    # MXU dot with contraction depth K*N.
    xw1 = (xr_ref[...] * w1rep_ref[...]).astype(jnp.bfloat16)          # (K*N, F1)
    h1 = h1 + jnp.dot(a_ref[...], xw1,
                      preferred_element_type=jnp.float32)              # (N,K*N)@(K*N,F1)

    # ELU(alpha=1), f32 elementwise (VPU/EUP)
    h1 = jnp.where(h1 > 0.0, h1, jnp.exp(jnp.minimum(h1, 0.0)) - 1.0)
    h1b = h1.astype(jnp.bfloat16)

    # ---- conv2 ----------------------------------------------------------------
    # Build the stacked spline operand vstack_k(h1 @ W2_k) in VMEM scratch
    # (K small MXU dots, static row offsets), then contract against A in ONE deep dot.
    for k in range(k_basis):
        wk = w2s_ref[k * f1:(k + 1) * f1, :]                            # (F1, F2) bf16
        xw2_scr[k * n:(k + 1) * n, :] = jnp.dot(
            h1b, wk, preferred_element_type=jnp.float32).astype(jnp.bfloat16)

    h2 = jnp.dot(h1, w2r_ref[...],
                 preferred_element_type=jnp.float32) + b2_ref[...]      # (N, F2)
    h2 = h2 + jnp.dot(a_ref[...], xw2_scr[...],
                      preferred_element_type=jnp.float32)               # (N,K*N)@(K*N,F2)

    # F.dropout: identity under eval semantics.
    # ---- log_softmax along the feature axis (f32) ------------------------------
    m = jnp.max(h2, axis=-1, keepdims=True)
    s = h2 - m
    lse = jnp.log(jnp.sum(jnp.exp(s), axis=-1, keepdims=True))
    o_ref[...] = s - lse


# ------------------------------ JAX glue ---------------------------------------

def build_spline_adjacency(edge_index, edge_attr, num_nodes, kernel_size):
    """Dense A[k, dst, src] with degree-1 open-spline basis and mean aggregation."""
    src = edge_index[0]
    dst = edge_index[1]
    u = jnp.clip(edge_attr[:, 0].astype(jnp.float32), 0.0, 1.0)
    pos = u * (kernel_size - 1)
    k0 = jnp.clip(jnp.floor(pos).astype(jnp.int32), 0, kernel_size - 1)
    frac = pos - k0.astype(jnp.float32)
    k1 = jnp.clip(k0 + 1, 0, kernel_size - 1)

    a = jnp.zeros((kernel_size, num_nodes, num_nodes), dtype=jnp.float32)
    a = a.at[k0, dst, src].add(1.0 - frac)
    a = a.at[k1, dst, src].add(frac)

    deg = jnp.zeros((num_nodes,), dtype=jnp.float32).at[dst].add(1.0)
    a = a / jnp.maximum(deg, 1.0)[None, :, None]
    return a


def init_params(key):
    k = jax.random.split(key, 10)
    scale = 0.1
    params = {
        # conv1: SplineConv(1, 32, dim=1, kernel_size=5)
        "w1": scale * jax.random.normal(k[0], (K_BASIS, 1, F1), jnp.float32),
        "w1_root": scale * jax.random.normal(k[1], (1, F1), jnp.float32),
        "b1": scale * jax.random.normal(k[2], (F1,), jnp.float32),
        # conv2: SplineConv(32, 64, dim=1, kernel_size=5)
        "w2": scale * jax.random.normal(k[3], (K_BASIS, F1, F2), jnp.float32),
        "w2_root": scale * jax.random.normal(k[4], (F1, F2), jnp.float32),
        "b2": scale * jax.random.normal(k[5], (F2,), jnp.float32),
        # lin1 / lin2 are declared in the reference __init__ but never used in forward().
        "lin1_w": scale * jax.random.normal(k[6], (64, 128), jnp.float32),
        "lin1_b": scale * jax.random.normal(k[7], (128,), jnp.float32),
        "lin2_w": scale * jax.random.normal(k[8], (128, 10), jnp.float32),
        "lin2_b": scale * jax.random.normal(k[9], (10,), jnp.float32),
    }
    return params


@jax.jit
def spline_cnn_forward(x, edge_index, edge_attr, params):
    n = x.shape[0]
    a = build_spline_adjacency(edge_index, edge_attr, n, kernel_size=K_BASIS)

    # Layout prep done once per call by XLA (outside the kernel):
    # a_cat[i, k*N + j] = A_k[i, j]  ->  spline aggregation is one deep MXU dot.
    a_cat = jnp.transpose(a, (1, 0, 2)).reshape(n, K_BASIS * n)
    xr = jnp.tile(x.astype(jnp.float32), (K_BASIS, 1))                   # (K*N, 1)
    w1_rep = jnp.repeat(params["w1"][:, 0, :], n, axis=0)                # (K*N, F1)
    w1_root = params["w1_root"].reshape(1, F1)                           # (1, F1)
    b1 = params["b1"].reshape(1, F1)                                     # (1, F1)
    w2_stack = params["w2"].reshape(K_BASIS * F1, F2)                    # (K*F1, F2)
    b2 = params["b2"].reshape(1, F2)                                     # (1, F2)

    kernel = functools.partial(_fused_spline_cnn_kernel,
                               k_basis=K_BASIS, n=n, f1=F1, f2=F2)
    # Single fused kernel, no grid: every operand fits VMEM comfortably
    # (A_cat: 40 KiB bf16, weights < 80 KiB, activations + scratch < 150 KiB).
    return pl.pallas_call(
        kernel,
        out_shape=jax.ShapeDtypeStruct((n, F2), jnp.float32),
        scratch_shapes=[pltpu.VMEM((K_BASIS * n, F2), jnp.bfloat16)],
    )(
        a_cat.astype(jnp.bfloat16),        # MXU operand: bf16 halves the largest DMA
        x.astype(jnp.float32),
        xr,
        w1_rep.astype(jnp.float32),
        w1_root.astype(jnp.float32),
        b1.astype(jnp.float32),
        w2_stack.astype(jnp.bfloat16),     # MXU operand
        params["w2_root"].astype(jnp.float32),
        b2.astype(jnp.float32),
    )


def _reference_forward(x, edge_index, edge_attr, params):
    """Pure-JAX (f32) reference of the same dense reformulation."""
    n = x.shape[0]
    a = build_spline_adjacency(edge_index, edge_attr, n, kernel_size=K_BASIS)

    def conv(h, w, w_root, b):
        out = h @ w_root + b.reshape(1, -1)
        for k in range(K_BASIS):
            out = out + a[k] @ (h @ w[k])
        return out

    h1 = conv(x, params["w1"], params["w1_root"], params["b1"])
    h1 = jnp.where(h1 > 0.0, h1, jnp.exp(jnp.minimum(h1, 0.0)) - 1.0)
    h2 = conv(h1, params["w2"], params["w2_root"], params["b2"])
    return jax.nn.log_softmax(h2, axis=-1)


# ------------------------------ main -------------------------------------------

if __name__ == "__main__":
    key = jax.random.PRNGKey(0)
    k_feat, k_edge, k_attr, k_params = jax.random.split(key, 4)

    N = 64   # nodes
    E = 256  # edges

    x = jax.random.normal(k_feat, (N, 1), jnp.float32)                 # node features
    edge_index = jax.random.randint(k_edge, (2, E), 0, N, jnp.int32)   # (2, E)
    edge_attr = jax.random.uniform(k_attr, (E, 1), jnp.float32)        # 1-D pseudo-coords

    params = init_params(k_params)

    out = spline_cnn_forward(x, edge_index, edge_attr, params)
    jax.block_until_ready(out)

    assert out.shape == (N, F2) and out.dtype == jnp.float32
    # log_softmax rows must sum to ~1 in probability space
    assert bool(jnp.all(jnp.abs(jnp.sum(jnp.exp(out), axis=1) - 1.0) < 1e-4))
    # match the pure-JAX f32 reference (bf16 matmul operands -> loose tolerance)
    ref = _reference_forward(x, edge_index, edge_attr, params)
    assert bool(jnp.max(jnp.abs(out - ref)) < 2e-2)

    print("KERNEL_OK")
</pallas_src>

<mosaic_0001>
module attributes {stable_mosaic.version = 11 : i64} {
  func.func private @main(%arg0: i32) attributes {dimension_semantics = [#tpu.dimension_semantics<core_parallel>], iteration_bounds = array<i64: 2>, tpu.core_type = #tpu.core_type<sc_scalar_subcore>, window_params = []} {
    return
  }
}

module attributes {stable_mosaic.version = 11 : i64} {
  func.func private @main(%arg0: i32) attributes {dimension_semantics = [#tpu.dimension_semantics<core_parallel>], iteration_bounds = array<i64: 2>, tpu.core_type = #tpu.core_type<sc_scalar_subcore>, window_params = []} {
    return
  }
}

module attributes {stable_mosaic.version = 11 : i64} {
  func.func @_fused_spline_cnn_kernel(%arg0: memref<64x320xbf16, #tpu.memory_space<vmem>>, %arg1: memref<64x1xf32, #tpu.memory_space<vmem>>, %arg2: memref<320x1xf32, #tpu.memory_space<vmem>>, %arg3: memref<320x32xf32, #tpu.memory_space<vmem>>, %arg4: memref<1x32xf32, #tpu.memory_space<vmem>>, %arg5: memref<1x32xf32, #tpu.memory_space<vmem>>, %arg6: memref<160x64xbf16, #tpu.memory_space<vmem>>, %arg7: memref<32x64xf32, #tpu.memory_space<vmem>>, %arg8: memref<1x64xf32, #tpu.memory_space<vmem>>, %arg9: memref<64x64xf32, #tpu.memory_space<vmem>>, %arg10: memref<320x64xbf16, #tpu.memory_space<vmem>>) attributes {dimension_semantics = [], scalar_prefetch = 0 : i64, scratch_operands = 1 : i64, tpu.core_type = #tpu.core_type<tc>} {
    %c0 = arith.constant 0 : index
    %c0_0 = arith.constant 0 : index
    %0 = vector.load %arg1[%c0, %c0_0] : memref<64x1xf32, #tpu.memory_space<vmem>>, vector<64x1xf32>
    %c0_1 = arith.constant 0 : index
    %c0_2 = arith.constant 0 : index
    %1 = vector.load %arg4[%c0_1, %c0_2] : memref<1x32xf32, #tpu.memory_space<vmem>>, vector<1x32xf32>
    %2 = vector.broadcast %0 : vector<64x1xf32> to vector<64x32xf32>
    %3 = vector.broadcast %1 : vector<1x32xf32> to vector<64x32xf32>
    %4 = arith.mulf %2, %3 : vector<64x32xf32>
    %c0_3 = arith.constant 0 : index
    %c0_4 = arith.constant 0 : index
    %5 = vector.load %arg5[%c0_3, %c0_4] : memref<1x32xf32, #tpu.memory_space<vmem>>, vector<1x32xf32>
    %6 = vector.broadcast %5 : vector<1x32xf32> to vector<64x32xf32>
    %7 = arith.addf %4, %6 : vector<64x32xf32>
    %c0_5 = arith.constant 0 : index
    %c0_6 = arith.constant 0 : index
    %8 = vector.load %arg2[%c0_5, %c0_6] : memref<320x1xf32, #tpu.memory_space<vmem>>, vector<320x1xf32>
    %c0_7 = arith.constant 0 : index
    %c0_8 = arith.constant 0 : index
    %9 = vector.load %arg3[%c0_7, %c0_8] : memref<320x32xf32, #tpu.memory_space<vmem>>, vector<320x32xf32>
    %10 = vector.broadcast %8 : vector<320x1xf32> to vector<320x32xf32>
    %11 = arith.mulf %10, %9 : vector<320x32xf32>
    %12 = arith.truncf %11 : vector<320x32xf32> to vector<320x32xbf16>
    %c0_9 = arith.constant 0 : index
    %c0_10 = arith.constant 0 : index
    %13 = vector.load %arg0[%c0_9, %c0_10] : memref<64x320xbf16, #tpu.memory_space<vmem>>, vector<64x320xbf16>
    %cst = arith.constant dense<0.000000e+00> : vector<64x32xf32>
    %14 = tpu.matmul %13, %12, %cst {dimension_numbers = #tpu.dot_dimension_numbers<[1], [0], [0], [1], [0, 0, 1, 1], [], []>} : vector<64x320xbf16>, vector<320x32xbf16>, vector<64x32xf32> -> vector<64x32xf32>
    %15 = arith.addf %7, %14 : vector<64x32xf32>
    %cst_11 = arith.constant 0.000000e+00 : f32
    %16 = vector.broadcast %cst_11 : f32 to vector<64x32xf32>
    %17 = arith.cmpf ogt, %15, %16 : vector<64x32xf32>
    %cst_12 = arith.constant 0.000000e+00 : f32
    %18 = vector.broadcast %cst_12 : f32 to vector<64x32xf32>
    %19 = arith.minimumf %15, %18 : vector<64x32xf32>
    %20 = math.exp %19 : vector<64x32xf32>
    %cst_13 = arith.constant 1.000000e+00 : f32
    %21 = vector.broadcast %cst_13 : f32 to vector<64x32xf32>
    %22 = arith.subf %20, %21 : vector<64x32xf32>
    %23 = arith.select %17, %15, %22 : vector<64x32xi1>, vector<64x32xf32>
    %24 = arith.truncf %23 : vector<64x32xf32> to vector<64x32xbf16>
    %c0_14 = arith.constant 0 : index
    %c0_15 = arith.constant 0 : index
    %25 = vector.load %arg6[%c0_14, %c0_15] : memref<160x64xbf16, #tpu.memory_space<vmem>>, vector<32x64xbf16>
    %cst_16 = arith.constant dense<0.000000e+00> : vector<64x64xf32>
    %26 = tpu.matmul %24, %25, %cst_16 {dimension_numbers = #tpu.dot_dimension_numbers<[1], [0], [0], [1], [0, 0, 1, 1], [], []>} : vector<64x32xbf16>, vector<32x64xbf16>, vector<64x64xf32> -> vector<64x64xf32>
    %27 = arith.truncf %26 : vector<64x64xf32> to vector<64x64xbf16>
    %c0_17 = arith.constant 0 : index
    %c0_18 = arith.constant 0 : index
    %28 = vector.load %arg10[%c0_17, %c0_18] : memref<320x64xbf16, #tpu.memory_space<vmem>>, vector<64x64xbf16>
    tpu.vector_store %arg10[%c0_17, %c0_18], %27 {strides = array<i32>} : memref<320x64xbf16, #tpu.memory_space<vmem>>, vector<64x64xbf16>,
    %c32 = arith.constant 32 : index
    %c0_19 = arith.constant 0 : index
    %29 = vector.load %arg6[%c32, %c0_19] : memref<160x64xbf16, #tpu.memory_space<vmem>>, vector<32x64xbf16>
    %cst_20 = arith.constant dense<0.000000e+00> : vector<64x64xf32>
    %30 = tpu.matmul %24, %29, %cst_20 {dimension_numbers = #tpu.dot_dimension_numbers<[1], [0], [0], [1], [0, 0, 1, 1], [], []>} : vector<64x32xbf16>, vector<32x64xbf16>, vector<64x64xf32> -> vector<64x64xf32>
    %31 = arith.truncf %30 : vector<64x64xf32> to vector<64x64xbf16>
    %c64 = arith.constant 64 : index
    %c0_21 = arith.constant 0 : index
    %32 = vector.load %arg10[%c64, %c0_21] : memref<320x64xbf16, #tpu.memory_space<vmem>>, vector<64x64xbf16>
    tpu.vector_store %arg10[%c64, %c0_21], %31 {strides = array<i32>} : memref<320x64xbf16, #tpu.memory_space<vmem>>, vector<64x64xbf16>,
    %c64_22 = arith.constant 64 : index
    %c0_23 = arith.constant 0 : index
    %33 = vector.load %arg6[%c64_22, %c0_23] : memref<160x64xbf16, #tpu.memory_space<vmem>>, vector<32x64xbf16>
    %cst_24 = arith.constant dense<0.000000e+00> : vector<64x64xf32>
    %34 = tpu.matmul %24, %33, %cst_24 {dimension_numbers = #tpu.dot_dimension_numbers<[1], [0], [0], [1], [0, 0, 1, 1], [], []>} : vector<64x32xbf16>, vector<32x64xbf16>, vector<64x64xf32> -> vector<64x64xf32>
    %35 = arith.truncf %34 : vector<64x64xf32> to vector<64x64xbf16>
    %c128 = arith.constant 128 : index
    %c0_25 = arith.constant 0 : index
    %36 = vector.load %arg10[%c128, %c0_25] : memref<320x64xbf16, #tpu.memory_space<vmem>>, vector<64x64xbf16>
    tpu.vector_store %arg10[%c128, %c0_25], %35 {strides = array<i32>} : memref<320x64xbf16, #tpu.memory_space<vmem>>, vector<64x64xbf16>,
    %c96 = arith.constant 96 : index
    %c0_26 = arith.constant 0 : index
    %37 = vector.load %arg6[%c96, %c0_26] : memref<160x64xbf16, #tpu.memory_space<vmem>>, vector<32x64xbf16>
    %cst_27 = arith.constant dense<0.000000e+00> : vector<64x64xf32>
    %38 = tpu.matmul %24, %37, %cst_27 {dimension_numbers = #tpu.dot_dimension_numbers<[1], [0], [0], [1], [0, 0, 1, 1], [], []>} : vector<64x32xbf16>, vector<32x64xbf16>, vector<64x64xf32> -> vector<64x64xf32>
    %39 = arith.truncf %38 : vector<64x64xf32> to vector<64x64xbf16>
    %c192 = arith.constant 192 : index
    %c0_28 = arith.constant 0 : index
    %40 = vector.load %arg10[%c192, %c0_28] : memref<320x64xbf16, #tpu.memory_space<vmem>>, vector<64x64xbf16>
    tpu.vector_store %arg10[%c192, %c0_28], %39 {strides = array<i32>} : memref<320x64xbf16, #tpu.memory_space<vmem>>, vector<64x64xbf16>,
    %c128_29 = arith.constant 128 : index
    %c0_30 = arith.constant 0 : index
    %41 = vector.load %arg6[%c128_29, %c0_30] : memref<160x64xbf16, #tpu.memory_space<vmem>>, vector<32x64xbf16>
    %cst_31 = arith.constant dense<0.000000e+00> : vector<64x64xf32>
    %42 = tpu.matmul %24, %41, %cst_31 {dimension_numbers = #tpu.dot_dimension_numbers<[1], [0], [0], [1], [0, 0, 1, 1], [], []>} : vector<64x32xbf16>, vector<32x64xbf16>, vector<64x64xf32> -> vector<64x64xf32>
    %43 = arith.truncf %42 : vector<64x64xf32> to vector<64x64xbf16>
    %c256 = arith.constant 256 : index
    %c0_32 = arith.constant 0 : index
    %44 = vector.load %arg10[%c256, %c0_32] : memref<320x64xbf16, #tpu.memory_space<vmem>>, vector<64x64xbf16>
    tpu.vector_store %arg10[%c256, %c0_32], %43 {strides = array<i32>} : memref<320x64xbf16, #tpu.memory_space<vmem>>, vector<64x64xbf16>,
    %c0_33 = arith.constant 0 : index
    %c0_34 = arith.constant 0 : index
    %45 = vector.load %arg7[%c0_33, %c0_34] : memref<32x64xf32, #tpu.memory_space<vmem>>, vector<32x64xf32>
    %cst_35 = arith.constant dense<0.000000e+00> : vector<64x64xf32>
    %46 = tpu.matmul %23, %45, %cst_35 {dimension_numbers = #tpu.dot_dimension_numbers<[1], [0], [0], [1], [0, 0, 1, 1], [], []>} : vector<64x32xf32>, vector<32x64xf32>, vector<64x64xf32> -> vector<64x64xf32>
    %c0_36 = arith.constant 0 : index
    %c0_37 = arith.constant 0 : index
    %47 = vector.load %arg8[%c0_36, %c0_37] : memref<1x64xf32, #tpu.memory_space<vmem>>, vector<1x64xf32>
    %48 = vector.broadcast %47 : vector<1x64xf32> to vector<64x64xf32>
    %49 = arith.addf %46, %48 : vector<64x64xf32>
    %c0_38 = arith.constant 0 : index
    %c0_39 = arith.constant 0 : index
    %50 = vector.load %arg0[%c0_38, %c0_39] : memref<64x320xbf16, #tpu.memory_space<vmem>>, vector<64x320xbf16>
    %c0_40 = arith.constant 0 : index
    %c0_41 = arith.constant 0 : index
    %51 = vector.load %arg10[%c0_40, %c0_41] : memref<320x64xbf16, #tpu.memory_space<vmem>>, vector<320x64xbf16>
    %cst_42 = arith.constant dense<0.000000e+00> : vector<64x64xf32>
    %52 = tpu.matmul %50, %51, %cst_42 {dimension_numbers = #tpu.dot_dimension_numbers<[1], [0], [0], [1], [0, 0, 1, 1], [], []>} : vector<64x320xbf16>, vector<320x64xbf16>, vector<64x64xf32> -> vector<64x64xf32>
    %53 = arith.addf %49, %52 : vector<64x64xf32>
    %cst_43 = arith.constant dense<0xFF800000> : vector<64xf32>
    %54 = vector.multi_reduction <maximumf>, %53, %cst_43 [1] : vector<64x64xf32> to vector<64xf32>
    %55 = vector.shape_cast %54 : vector<64xf32> to vector<64x1xf32>
    %56 = vector.broadcast %55 : vector<64x1xf32> to vector<64x64xf32>
    %57 = arith.subf %53, %56 : vector<64x64xf32>
    %58 = math.exp %57 : vector<64x64xf32>
    %cst_44 = arith.constant dense<0.000000e+00> : vector<64xf32>
    %59 = vector.multi_reduction <add>, %58, %cst_44 [1] : vector<64x64xf32> to vector<64xf32>
    %60 = vector.shape_cast %59 : vector<64xf32> to vector<64x1xf32>
    %61 = math.log %60 : vector<64x1xf32>
    %62 = vector.broadcast %61 : vector<64x1xf32> to vector<64x64xf32>
    %63 = arith.subf %57, %62 : vector<64x64xf32>
    %c0_45 = arith.constant 0 : index
    %c0_46 = arith.constant 0 : index
    %64 = vector.load %arg9[%c0_45, %c0_46] : memref<64x64xf32, #tpu.memory_space<vmem>>, vector<64x64xf32>
    tpu.vector_store %arg9[%c0_45, %c0_46], %63 {strides = array<i32>} : memref<64x64xf32, #tpu.memory_space<vmem>>, vector<64x64xf32>,
    return
  }
}

</mosaic_0001>

<llo_original>
// kernel: spline_cnn_forward.1
$region0: #{spline_cnn_forward.1}
  #allocation0 [shape = 'u32[]', space=smem, size = 0x4, offset = 0x4, fixed_abs, tag = 'smem constant byte address 0x4 - core index']
  #allocation1 [shape = 'u32[144,128]{1,0:T(1,128)}', space=vmem, size = 0x12000, scoped, tag = 'internal scratch']
  #allocation2 [shape = 'bf16[320,64]{1,0:T(8,128)(2,1)}', space=vmem, size = 0x14000, scoped, tag = 'scratch operand']
  %s0 = inlined_call_operand.vmem [shape: bf16[64,320], index: 0, kind: input, shape index: {}]
  %s1 = inlined_call_operand.vmem [shape: f32[64,1], index: 1, kind: input, shape index: {}]
  %s2 = inlined_call_operand.vmem [shape: f32[320,1], index: 2, kind: input, shape index: {}]
  %s3 = inlined_call_operand.vmem [shape: f32[320,32], index: 3, kind: input, shape index: {}]
  %s4 = inlined_call_operand.vmem [shape: f32[1,32], index: 4, kind: input, shape index: {}]
  %s5 = inlined_call_operand.vmem [shape: f32[1,32], index: 5, kind: input, shape index: {}]
  %s6 = inlined_call_operand.vmem [shape: bf16[160,64], index: 6, kind: input, shape index: {}]
  %s7 = inlined_call_operand.vmem [shape: f32[32,64], index: 7, kind: input, shape index: {}]
  %s8 = inlined_call_operand.vmem [shape: f32[1,64], index: 8, kind: input, shape index: {}]
  %s9 = inlined_call_operand.hbm [shape: f32[64,64], index: 9, kind: output, shape index: {}]
  %s10 = sld [smem:[#allocation0]]
  $region46: #{spline_cnn_forward.1} parent=0
    _
  %s12 = ssub.s32 1, %s10
  %s13 = scalar_select 0, %s12, %s10
  $region1: #{spline_cnn_forward.1} parent=0
    #allocation3 [shape = 'u8[32768]{0}', space=vmem, size = 0x8000, scoped, tag = 'output window, operand 0, single buffered']
    #allocation4 [shape = 's32[1]{0}', space=sflag, size = 0x4, scoped, tag = 'scoped memory for spline_cnn_forward.1']
    %14 = vsyncpa [#allocation4], 0
    // Predicated region
    $region2: #{spline_cnn_forward.1} parent=1 // pred_check
      _
    $region3: #{spline_cnn_forward.1} parent=1 // pred_check_branch
      %16 = sbr.rel (0) target = $region5
    $region4: #{spline_cnn_forward.1} parent=1 // pred_region
      _
    $region5: #{spline_cnn_forward.1} parent=1 // pred_fallthru
      _
    // Predicated region
    $region6: #{spline_cnn_forward.1} parent=1 // pred_check
      _
    $region7: #{spline_cnn_forward.1} parent=1 // pred_check_branch
      %18 = sbr.rel (0) target = $region9
    $region8: #{spline_cnn_forward.1} parent=1 // pred_region
      _
    $region9: #{spline_cnn_forward.1} parent=1 // pred_fallthru
      _
    // Predicated region
    $region10: #{spline_cnn_forward.1} parent=1 // pred_check
      _
    $region11: #{spline_cnn_forward.1} parent=1 // pred_check_branch
      %20 = sbr.rel (0) target = $region13
    $region12: #{spline_cnn_forward.1} parent=1 // pred_region
      _
    $region13: #{spline_cnn_forward.1} parent=1 // pred_fallthru
      _
    // Predicated region
    $region14: #{spline_cnn_forward.1} parent=1 // pred_check
      _
    $region15: #{spline_cnn_forward.1} parent=1 // pred_check_branch
      %22 = sbr.rel (0) target = $region17
    $region16: #{spline_cnn_forward.1} parent=1 // pred_region
      _
    $region17: #{spline_cnn_forward.1} parent=1 // pred_fallthru
      _
    // Predicated region
    $region18: #{spline_cnn_forward.1} parent=1 // pred_check
      _
    $region19: #{spline_cnn_forward.1} parent=1 // pred_check_branch
      %24 = sbr.rel (0) target = $region21
    $region20: #{spline_cnn_forward.1} parent=1 // pred_region
      _
    $region21: #{spline_cnn_forward.1} parent=1 // pred_fallthru
      _
    // Predicated region
    $region22: #{spline_cnn_forward.1} parent=1 // pred_check
      _
    $region23: #{spline_cnn_forward.1} parent=1 // pred_check_branch
      %26 = sbr.rel (0) target = $region25
    $region24: #{spline_cnn_forward.1} parent=1 // pred_region
      _
    $region25: #{spline_cnn_forward.1} parent=1 // pred_fallthru
      _
    // Predicated region
    $region26: #{spline_cnn_forward.1} parent=1 // pred_check
      _
    $region27: #{spline_cnn_forward.1} parent=1 // pred_check_branch
      %28 = sbr.rel (0) target = $region29
    $region28: #{spline_cnn_forward.1} parent=1 // pred_region
      _
    $region29: #{spline_cnn_forward.1} parent=1 // pred_fallthru
      _
    // Predicated region
    $region30: #{spline_cnn_forward.1} parent=1 // pred_check
      _
    $region31: #{spline_cnn_forward.1} parent=1 // pred_check_branch
      %30 = sbr.rel (0) target = $region33
    $region32: #{spline_cnn_forward.1} parent=1 // pred_region
      _
    $region33: #{spline_cnn_forward.1} parent=1 // pred_fallthru
      _
    // Predicated region
    $region34: #{spline_cnn_forward.1} parent=1 // pred_check
      _
    $region35: #{spline_cnn_forward.1} parent=1 // pred_check_branch
      %32 = sbr.rel (0) target = $region37
    $region36: #{spline_cnn_forward.1} parent=1 // pred_region
      _
    $region37: #{spline_cnn_forward.1} parent=1 // pred_fallthru
      _
    %v34 = vld [vmem:[%s1] sm:$0xff]
    %v35 = vld [vmem:[%s1 + $0x8] sm:$0xff]
    %v36 = vld [vmem:[%s1 + $0x10] sm:$0xff]
    %v37 = vld [vmem:[%s1 + $0x18] sm:$0xff]
    %v38 = vld [vmem:[%s1 + $0x20] sm:$0xff]
    %v39 = vld [vmem:[%s1 + $0x28] sm:$0xff]
    %v40 = vld [vmem:[%s1 + $0x30] sm:$0xff]
    %v41 = vld [vmem:[%s1 + $0x38] sm:$0xff]
    %v42 = vld [vmem:[%s4] sm:$0x1]
    %44 = vset.pattern.permute.xlu0 0
    %45 = vperm.xlu0 %44, %v34
    %v46 = vpop.permute.xlu0 %45
    %49 = vset.pattern.permute.xlu0 0
    %50 = vperm.xlu0 %49, %v35
    %v51 = vpop.permute.xlu0 %50
    %54 = vset.pattern.permute.xlu0 0
    %55 = vperm.xlu0 %54, %v36
    %v56 = vpop.permute.xlu0 %55
    %59 = vset.pattern.permute.xlu0 0
    %60 = vperm.xlu0 %59, %v37
    %v61 = vpop.permute.xlu0 %60
    %64 = vset.pattern.permute.xlu0 0
    %65 = vperm.xlu0 %64, %v38
    %v66 = vpop.permute.xlu0 %65
    %69 = vset.pattern.permute.xlu0 0
    %70 = vperm.xlu0 %69, %v39
    %v71 = vpop.permute.xlu0 %70
    %74 = vset.pattern.permute.xlu0 0
    %75 = vperm.xlu0 %74, %v40
    %v76 = vpop.permute.xlu0 %75
    %79 = vset.pattern.permute.xlu0 0
    %80 = vperm.xlu0 %79, %v41
    %v81 = vpop.permute.xlu0 %80
    %v84 = vlaneseq
    %v85 = vshrl.u32 %v84, 7
    %v86 = vsub.s32 0, %v85
    %v87 = vrot.slane %v42, %v86
    %v89 = vmul.f32 %v46, %v87
    %v90 = vmul.f32 %v51, %v87
    %v91 = vmul.f32 %v56, %v87
    %v92 = vmul.f32 %v61, %v87
    %v93 = vmul.f32 %v66, %v87
    %v94 = vmul.f32 %v71, %v87
    %v95 = vmul.f32 %v76, %v87
    %v96 = vmul.f32 %v81, %v87
    %v97 = vld [vmem:[%s5] sm:$0x1]
    %v99 = vlaneseq
    %v100 = vshrl.u32 %v99, 7
    %v101 = vsub.s32 0, %v100
    %v102 = vrot.slane %v97, %v101
    %v104 = vadd.f32 %v89, %v102
    %v105 = vadd.f32 %v90, %v102
    %v106 = vadd.f32 %v91, %v102
    %v107 = vadd.f32 %v92, %v102
    %v108 = vadd.f32 %v93, %v102
    %v109 = vadd.f32 %v94, %v102
    %v110 = vadd.f32 %v95, %v102
    %v111 = vadd.f32 %v96, %v102
    %v112 = vld [vmem:[%s2] sm:$0xff]
    %v113 = vld [vmem:[%s2 + $0x8] sm:$0xff]
    %v114 = vld [vmem:[%s2 + $0x10] sm:$0xff]
    %v115 = vld [vmem:[%s2 + $0x18] sm:$0xff]
    %v116 = vld [vmem:[%s2 + $0x20] sm:$0xff]
    %v117 = vld [vmem:[%s2 + $0x28] sm:$0xff]
    %v118 = vld [vmem:[%s2 + $0x30] sm:$0xff]
    %v119 = vld [vmem:[%s2 + $0x38] sm:$0xff]
    %v120 = vld [vmem:[%s2 + $0x40] sm:$0xff]
    %v121 = vld [vmem:[%s2 + $0x48] sm:$0xff]
    %v122 = vld [vmem:[%s2 + $0x50] sm:$0xff]
    %v123 = vld [vmem:[%s2 + $0x58] sm:$0xff]
    %v124 = vld [vmem:[%s2 + $0x60] sm:$0xff]
    %v125 = vld [vmem:[%s2 + $0x68] sm:$0xff]
    %v126 = vld [vmem:[%s2 + $0x70] sm:$0xff]
    %v127 = vld [vmem:[%s2 + $0x78] sm:$0xff]
    %v128 = vld [vmem:[%s2 + $0x80] sm:$0xff]
    %v129 = vld [vmem:[%s2 + $0x88] sm:$0xff]
    %v130 = vld [vmem:[%s2 + $0x90] sm:$0xff]
    %v131 = vld [vmem:[%s2 + $0x98] sm:$0xff]
    %v132 = vld [vmem:[%s2 + $0xa0] sm:$0xff]
    %v133 = vld [vmem:[%s2 + $0xa8] sm:$0xff]
    %v134 = vld [vmem:[%s2 + $0xb0] sm:$0xff]
    %v135 = vld [vmem:[%s2 + $0xb8] sm:$0xff]
    %v136 = vld [vmem:[%s2 + $0xc0] sm:$0xff]
    %v137 = vld [vmem:[%s2 + $0xc8] sm:$0xff]
    %v138 = vld [vmem:[%s2 + $0xd0] sm:$0xff]
    %v139 = vld [vmem:[%s2 + $0xd8] sm:$0xff]
    %v140 = vld [vmem:[%s2 + $0xe0] sm:$0xff]
    %v141 = vld [vmem:[%s2 + $0xe8] sm:$0xff]
    %v142 = vld [vmem:[%s2 + $0xf0] sm:$0xff]
    %v143 = vld [vmem:[%s2 + $0xf8] sm:$0xff]
    %v144 = vld [vmem:[%s2 + $0x100] sm:$0xff]
    %v145 = vld [vmem:[%s2 + $0x108] sm:$0xff]
    %v146 = vld [vmem:[%s2 + $0x110] sm:$0xff]
    %v147 = vld [vmem:[%s2 + $0x118] sm:$0xff]
    %v148 = vld [vmem:[%s2 + $0x120] sm:$0xff]
    %v149 = vld [vmem:[%s2 + $0x128] sm:$0xff]
    %v150 = vld [vmem:[%s2 + $0x130] sm:$0xff]
    %v151 = vld [vmem:[%s2 + $0x138] sm:$0xff]
    %v152 = vld [vmem:[%s3] sm:$0xff]
    %v153 = vld [vmem:[%s3 + $0x8] sm:$0xff]
    %v154 = vld [vmem:[%s3 + $0x10] sm:$0xff]
    %v155 = vld [vmem:[%s3 + $0x18] sm:$0xff]
    %v156 = vld [vmem:[%s3 + $0x20] sm:$0xff]
    %v157 = vld [vmem:[%s3 + $0x28] sm:$0xff]
    %v158 = vld [vmem:[%s3 + $0x30] sm:$0xff]
    %v159 = vld [vmem:[%s3 + $0x38] sm:$0xff]
    %v160 = vld [vmem:[%s3 + $0x40] sm:$0xff]
    %v161 = vld [vmem:[%s3 + $0x48] sm:$0xff]
    %v162 = vld [vmem:[%s3 + $0x50] sm:$0xff]
    %v163 = vld [vmem:[%s3 + $0x58] sm:$0xff]
    %v164 = vld [vmem:[%s3 + $0x60] sm:$0xff]
    %v165 = vld [vmem:[%s3 + $0x68] sm:$0xff]
    %v166 = vld [vmem:[%s3 + $0x70] sm:$0xff]
    %v167 = vld [vmem:[%s3 + $0x78] sm:$0xff]
    %v168 = vld [vmem:[%s3 + $0x80] sm:$0xff]
    %v169 = vld [vmem:[%s3 + $0x88] sm:$0xff]
    %v170 = vld [vmem:[%s3 + $0x90] sm:$0xff]
    %v171 = vld [vmem:[%s3 + $0x98] sm:$0xff]
    %v172 = vld [vmem:[%s3 + $0xa0] sm:$0xff]
    %v173 = vld [vmem:[%s3 + $0xa8] sm:$0xff]
    %v174 = vld [vmem:[%s3 + $0xb0] sm:$0xff]
    %v175 = vld [vmem:[%s3 + $0xb8] sm:$0xff]
    %v176 = vld [vmem:[%s3 + $0xc0] sm:$0xff]
    %v177 = vld [vmem:[%s3 + $0xc8] sm:$0xff]
    %v178 = vld [vmem:[%s3 + $0xd0] sm:$0xff]
    %v179 = vld [vmem:[%s3 + $0xd8] sm:$0xff]
    %v180 = vld [vmem:[%s3 + $0xe0] sm:$0xff]
    %v181 = vld [vmem:[%s3 + $0xe8] sm:$0xff]
    %v182 = vld [vmem:[%s3 + $0xf0] sm:$0xff]
    %v183 = vld [vmem:[%s3 + $0xf8] sm:$0xff]
    %v184 = vld [vmem:[%s3 + $0x100] sm:$0xff]
    %v185 = vld [vmem:[%s3 + $0x108] sm:$0xff]
    %v186 = vld [vmem:[%s3 + $0x110] sm:$0xff]
    %v187 = vld [vmem:[%s3 + $0x118] sm:$0xff]
    %v188 = vld [vmem:[%s3 + $0x120] sm:$0xff]
    %v189 = vld [vmem:[%s3 + $0x128] sm:$0xff]
    %v190 = vld [vmem:[%s3 + $0x130] sm:$0xff]
    %v191 = vld [vmem:[%s3 + $0x138] sm:$0xff]
    %193 = vset.pattern.permute.xlu0 0
    %194 = vperm.xlu0 %193, %v112
    %v195 = vpop.permute.xlu0 %194
    %198 = vset.pattern.permute.xlu0 0
    %199 = vperm.xlu0 %198, %v113
    %v200 = vpop.permute.xlu0 %199
    %203 = vset.pattern.permute.xlu0 0
    %204 = vperm.xlu0 %203, %v114
    %v205 = vpop.permute.xlu0 %204
    %208 = vset.pattern.permute.xlu0 0
    %209 = vperm.xlu0 %208, %v115
    %v210 = vpop.permute.xlu0 %209
    %213 = vset.pattern.permute.xlu0 0
    %214 = vperm.xlu0 %213, %v116
    %v215 = vpop.permute.xlu0 %214
    %218 = vset.pattern.permute.xlu0 0
    %219 = vperm.xlu0 %218, %v117
    %v220 = vpop.permute.xlu0 %219
    %223 = vset.pattern.permute.xlu0 0
    %224 = vperm.xlu0 %223, %v118
    %v225 = vpop.permute.xlu0 %224
    %228 = vset.pattern.permute.xlu0 0
    %229 = vperm.xlu0 %228, %v119
    %v230 = vpop.permute.xlu0 %229
    %233 = vset.pattern.permute.xlu0 0
    %234 = vperm.xlu0 %233, %v120
    %v235 = vpop.permute.xlu0 %234
    %238 = vset.pattern.permute.xlu0 0
    %239 = vperm.xlu0 %238, %v121
    %v240 = vpop.permute.xlu0 %239
    %243 = vset.pattern.permute.xlu0 0
    %244 = vperm.xlu0 %243, %v122
    %v245 = vpop.permute.xlu0 %244
    %248 = vset.pattern.permute.xlu0 0
    %249 = vperm.xlu0 %248, %v123
    %v250 = vpop.permute.xlu0 %249
    %253 = vset.pattern.permute.xlu0 0
    %254 = vperm.xlu0 %253, %v124
    %v255 = vpop.permute.xlu0 %254
    %258 = vset.pattern.permute.xlu0 0
    %259 = vperm.xlu0 %258, %v125
    %v260 = vpop.permute.xlu0 %259
    %263 = vset.pattern.permute.xlu0 0
    %264 = vperm.xlu0 %263, %v126
    %v265 = vpop.permute.xlu0 %264
    %268 = vset.pattern.permute.xlu0 0
    %269 = vperm.xlu0 %268, %v127
    %v270 = vpop.permute.xlu0 %269
    %273 = vset.pattern.permute.xlu0 0
    %274 = vperm.xlu0 %273, %v128
    %v275 = vpop.permute.xlu0 %274
    %278 = vset.pattern.permute.xlu0 0
    %279 = vperm.xlu0 %278, %v129
    %v280 = vpop.permute.xlu0 %279
    %283 = vset.pattern.permute.xlu0 0
    %284 = vperm.xlu0 %283, %v130
    %v285 = vpop.permute.xlu0 %284
    %288 = vset.pattern.permute.xlu0 0
    %289 = vperm.xlu0 %288, %v131
    %v290 = vpop.permute.xlu0 %289
    %293 = vset.pattern.permute.xlu0 0
    %294 = vperm.xlu0 %293, %v132
    %v295 = vpop.permute.xlu0 %294
    %298 = vset.pattern.permute.xlu0 0
    %299 = vperm.xlu0 %298, %v133
    %v300 = vpop.permute.xlu0 %299
    %303 = vset.pattern.permute.xlu0 0
    %304 = vperm.xlu0 %303, %v134
    %v305 = vpop.permute.xlu0 %304
    %308 = vset.pattern.permute.xlu0 0
    %309 = vperm.xlu0 %308, %v135
    %v310 = vpop.permute.xlu0 %309
    %313 = vset.pattern.permute.xlu0 0
    %314 = vperm.xlu0 %313, %v136
    %v315 = vpop.permute.xlu0 %314
    %318 = vset.pattern.permute.xlu0 0
    %319 = vperm.xlu0 %318, %v137
    %v320 = vpop.permute.xlu0 %319
    %323 = vset.pattern.permute.xlu0 0
    %324 = vperm.xlu0 %323, %v138
    %v325 = vpop.permute.xlu0 %324
    %328 = vset.pattern.permute.xlu0 0
    %329 = vperm.xlu0 %328, %v139
    %v330 = vpop.permute.xlu0 %329
    %333 = vset.pattern.permute.xlu0 0
    %334 = vperm.xlu0 %333, %v140
    %v335 = vpop.permute.xlu0 %334
    %338 = vset.pattern.permute.xlu0 0
    %339 = vperm.xlu0 %338, %v141
    %v340 = vpop.permute.xlu0 %339
    %343 = vset.pattern.permute.xlu0 0
    %344 = vperm.xlu0 %343, %v142
    %v345 = vpop.permute.xlu0 %344
    %348 = vset.pattern.permute.xlu0 0
    %349 = vperm.xlu0 %348, %v143
    %v350 = vpop.permute.xlu0 %349
    %353 = vset.pattern.permute.xlu0 0
    %354 = vperm.xlu0 %353, %v144
    %v355 = vpop.permute.xlu0 %354
    %358 = vset.pattern.permute.xlu0 0
    %359 = vperm.xlu0 %358, %v145
    %v360 = vpop.permute.xlu0 %359
    %363 = vset.pattern.permute.xlu0 0
    %364 = vperm.xlu0 %363, %v146
    %v365 = vpop.permute.xlu0 %364
    %368 = vset.pattern.permute.xlu0 0
    %369 = vperm.xlu0 %368, %v147
    %v370 = vpop.permute.xlu0 %369
    %373 = vset.pattern.permute.xlu0 0
    %374 = vperm.xlu0 %373, %v148
    %v375 = vpop.permute.xlu0 %374
    %378 = vset.pattern.permute.xlu0 0
    %379 = vperm.xlu0 %378, %v149
    %v380 = vpop.permute.xlu0 %379
    %383 = vset.pattern.permute.xlu0 0
    %384 = vperm.xlu0 %383, %v150
    %v385 = vpop.permute.xlu0 %384
    %388 = vset.pattern.permute.xlu0 0
    %389 = vperm.xlu0 %388, %v151
    %v390 = vpop.permute.xlu0 %389
    %v392 = vmul.f32 %v195, %v152
    %v393 = vmul.f32 %v200, %v153
    %v394 = vmul.f32 %v205, %v154
    %v395 = vmul.f32 %v210, %v155
    %v396 = vmul.f32 %v215, %v156
    %v397 = vmul.f32 %v220, %v157
    %v398 = vmul.f32 %v225, %v158
    %v399 = vmul.f32 %v230, %v159
    %v400 = vmul.f32 %v235, %v160
    %v401 = vmul.f32 %v240, %v161
    %v402 = vmul.f32 %v245, %v162
    %v403 = vmul.f32 %v250, %v163
    %v404 = vmul.f32 %v255, %v164
    %v405 = vmul.f32 %v260, %v165
    %v406 = vmul.f32 %v265, %v166
    %v407 = vmul.f32 %v270, %v167
    %v408 = vmul.f32 %v275, %v168
    %v409 = vmul.f32 %v280, %v169
    %v410 = vmul.f32 %v285, %v170
    %v411 = vmul.f32 %v290, %v171
    %v412 = vmul.f32 %v295, %v172
    %v413 = vmul.f32 %v300, %v173
    %v414 = vmul.f32 %v305, %v174
    %v415 = vmul.f32 %v310, %v175
    %v416 = vmul.f32 %v315, %v176
    %v417 = vmul.f32 %v320, %v177
    %v418 = vmul.f32 %v325, %v178
    %v419 = vmul.f32 %v330, %v179
    %v420 = vmul.f32 %v335, %v180
    %v421 = vmul.f32 %v340, %v181
    %v422 = vmul.f32 %v345, %v182
    %v423 = vmul.f32 %v350, %v183
    %v424 = vmul.f32 %v355, %v184
    %v425 = vmul.f32 %v360, %v185
    %v426 = vmul.f32 %v365, %v186
    %v427 = vmul.f32 %v370, %v187
    %v428 = vmul.f32 %v375, %v188
    %v429 = vmul.f32 %v380, %v189
    %v430 = vmul.f32 %v385, %v190
    %v431 = vmul.f32 %v390, %v191
    %v432 = vpack.c.bf16 %v393, %v392
    %v433 = vpack.c.bf16 %v395, %v394
    %v434 = vpack.c.bf16 %v397, %v396
    %v435 = vpack.c.bf16 %v399, %v398
    %v436 = vpack.c.bf16 %v401, %v400
    %v437 = vpack.c.bf16 %v403, %v402
    %v438 = vpack.c.bf16 %v405, %v404
    %v439 = vpack.c.bf16 %v407, %v406
    %v440 = vpack.c.bf16 %v409, %v408
    %v441 = vpack.c.bf16 %v411, %v410
    %v442 = vpack.c.bf16 %v413, %v412
    %v443 = vpack.c.bf16 %v415, %v414
    %v444 = vpack.c.bf16 %v417, %v416
    %v445 = vpack.c.bf16 %v419, %v418
    %v446 = vpack.c.bf16 %v421, %v420
    %v447 = vpack.c.bf16 %v423, %v422
    %v448 = vpack.c.bf16 %v425, %v424
    %v449 = vpack.c.bf16 %v427, %v426
    %v450 = vpack.c.bf16 %v429, %v428
    %v451 = vpack.c.bf16 %v431, %v430
    %v452 = vld [vmem:[%s0] sm:$0xff]
    %v453 = vld [vmem:[%s0 + $0x8] sm:$0xf]
    %v454 = vld [vmem:[%s0 + $0xc] sm:$0xff]
    %v455 = vld [vmem:[%s0 + $0x14] sm:$0xf]
    %v456 = vld [vmem:[%s0 + $0x18] sm:$0xff]
    %v457 = vld [vmem:[%s0 + $0x20] sm:$0xf]
    %v458 = vld [vmem:[%s0 + $0x24] sm:$0xff]
    %v459 = vld [vmem:[%s0 + $0x2c] sm:$0xf]
    %v460 = vld [vmem:[%s0 + $0x30] sm:$0xff]
    %v461 = vld [vmem:[%s0 + $0x38] sm:$0xf]
    %v462 = vld [vmem:[%s0 + $0x3c] sm:$0xff]
    %v463 = vld [vmem:[%s0 + $0x44] sm:$0xf]
    %v464 = vld [vmem:[%s0 + $0x48] sm:$0xff]
    %v465 = vld [vmem:[%s0 + $0x50] sm:$0xf]
    %v466 = vld [vmem:[%s0 + $0x54] sm:$0xff]
    %v467 = vld [vmem:[%s0 + $0x5c] sm:$0xf]
    %v484 = vunpack.c.l.b16 %v452
    %v485 = vunpack.c.h.b16 %v452
    %v486 = vunpack.c.l.b16 %v453
    %v487 = vunpack.c.l.b16 %v454
    %v488 = vunpack.c.h.b16 %v454
    %v489 = vunpack.c.l.b16 %v455
    %v490 = vunpack.c.l.b16 %v456
    %v491 = vunpack.c.h.b16 %v456
    %v492 = vunpack.c.l.b16 %v457
    %v493 = vunpack.c.l.b16 %v458
    %v494 = vunpack.c.h.b16 %v458
    %v495 = vunpack.c.l.b16 %v459
    %v496 = vunpack.c.l.b16 %v460
    %v497 = vunpack.c.h.b16 %v460
    %v498 = vunpack.c.l.b16 %v461
    %v499 = vunpack.c.l.b16 %v462
    %v500 = vunpack.c.h.b16 %v462
    %v501 = vunpack.c.l.b16 %v463
    %v502 = vunpack.c.l.b16 %v464
    %v503 = vunpack.c.h.b16 %v464
    %v504 = vunpack.c.l.b16 %v465
    %v505 = vunpack.c.l.b16 %v466
    %v506 = vunpack.c.h.b16 %v466
    %v507 = vunpack.c.l.b16 %v467
    %v508 = vpack.c.b16 %v487, %v484
    %v509 = vpack.c.b16 %v488, %v485
    %v510 = vpack.c.b16 %v489, %v486
    %v511 = vpack.c.b16 %v493, %v490
    %v512 = vpack.c.b16 %v494, %v491
    %v513 = vpack.c.b16 %v495, %v492
    %v514 = vpack.c.b16 %v499, %v496
    %v515 = vpack.c.b16 %v500, %v497
    %v516 = vpack.c.b16 %v501, %v498
    %v517 = vpack.c.b16 %v505, %v502
    %v518 = vpack.c.b16 %v506, %v503
    %v519 = vpack.c.b16 %v507, %v504
    %vm528 = vcmask 523264
    %v530 = vsel %vm528, %v510, 0
    %v533 = vsel %vm528, %v513, 0
    %v536 = vsel %vm528, %v516, 0
    %v539 = vsel %vm528, %v519, 0
    %541 = vmatprep.subr.bf16.mxu0 0
    %542 = vmatpush1.bf16.msra.mxu0 %v439
    %543 = vmatprep.subr.bf16.mxu0 0
    %544 = vmatpush1.bf16.msra.mxu0 %v438
    %545 = vmatprep.subr.bf16.mxu0 0
    %546 = vmatpush1.bf16.msra.mxu0 %v437
    %547 = vmatprep.subr.bf16.mxu0 0
    %548 = vmatpush1.bf16.msra.mxu0 %v436
    %549 = vmatprep.subr.bf16.mxu0 0
    %550 = vmatpush1.bf16.msra.mxu0 %v435
    %551 = vmatprep.subr.bf16.mxu0 0
    %552 = vmatpush1.bf16.msra.mxu0 %v434
    %553 = vmatprep.subr.bf16.mxu0 0
    %554 = vmatpush1.bf16.msra.mxu0 %v433
    %555 = vmatprep.subr.bf16.mxu0 0
    %556 = vmatpush1.bf16.msra.mxu0 %v432
    %557 = vmatprep.subr.bf16.mxu0 0
    %558 = vmatpush2.bf16.msra.mxu0 %v447
    %559 = vmatprep.subr.bf16.mxu0 0
    %560 = vmatpush2.bf16.msra.mxu0 %v446
    %561 = vmatprep.subr.bf16.mxu0 0
    %562 = vmatpush2.bf16.msra.mxu0 %v445
    %563 = vmatprep.subr.bf16.mxu0 0
    %564 = vmatpush2.bf16.msra.mxu0 %v444
    %565 = vmatprep.subr.bf16.mxu0 0
    %566 = vmatpush2.bf16.msra.mxu0 %v443
    %567 = vmatprep.subr.bf16.mxu0 0
    %568 = vmatpush2.bf16.msra.mxu0 %v442
    %569 = vmatprep.subr.bf16.mxu0 0
    %570 = vmatpush2.bf16.msra.mxu0 %v441
    %571 = vmatprep.subr.bf16.mxu0 0
    %572 = vmatpush2.bf16.msra.mxu0 %v440
    %573 = vmatprep.mubr.bf16.mxu0 %v509
    %574 = vmatmul.mubr.bf16.gmra.mxu0 %v508
    %v575 = vpop.f32.mrf.mxu0
    %v576 = vadd.f32 0.0, %v575
    %v577 = vpop.f32.mrf.mxu0
    %v578 = vpop.f32.mrf.mxu0
    %v579 = vadd.f32 0.0, %v578
    %v580 = vpop.f32.mrf.mxu0
    %581 = vmatprep.mubr.bf16.mxu0 %v512
    %582 = vmatmul.mubr.bf16.gmra.mxu0 %v511
    %v583 = vpop.f32.mrf.mxu0
    %v584 = vadd.f32 0.0, %v583
    %v585 = vpop.f32.mrf.mxu0
    %v586 = vpop.f32.mrf.mxu0
    %v587 = vadd.f32 0.0, %v586
    %v588 = vpop.f32.mrf.mxu0
    %589 = vmatprep.mubr.bf16.mxu0 %v515
    %590 = vmatmul.mubr.bf16.gmra.mxu0 %v514
    %v591 = vpop.f32.mrf.mxu0
    %v592 = vadd.f32 0.0, %v591
    %v593 = vpop.f32.mrf.mxu0
    %v594 = vpop.f32.mrf.mxu0
    %v595 = vadd.f32 0.0, %v594
    %v596 = vpop.f32.mrf.mxu0
    %597 = vmatprep.mubr.bf16.mxu0 %v518
    %598 = vmatmul.mubr.bf16.gmra.mxu0 %v517
    %v599 = vpop.f32.mrf.mxu0
    %v600 = vadd.f32 0.0, %v599
    %v601 = vpop.f32.mrf.mxu0
    %v602 = vpop.f32.mrf.mxu0
    %v603 = vadd.f32 0.0, %v602
    %v604 = vpop.f32.mrf.mxu0
    %605 = vdwg.mxu0
    %606 = vmatprep.subr.bf16.mxu0 0
    %607 = vmatpush1.bf16.msra.mxu0 0
    %608 = vmatprep.subr.bf16.mxu0 0
    %609 = vmatpush1.bf16.msra.mxu0 0
    %610 = vmatprep.subr.bf16.mxu0 0
    %611 = vmatpush1.bf16.msra.mxu0 0
    %612 = vmatprep.subr.bf16.mxu0 0
    %613 = vmatpush1.bf16.msra.mxu0 0
    %614 = vmatprep.subr.bf16.mxu0 0
    %615 = vmatpush1.bf16.msra.mxu0 %v451
    %616 = vmatprep.subr.bf16.mxu0 0
    %617 = vmatpush1.bf16.msra.mxu0 %v450
    %618 = vmatprep.subr.bf16.mxu0 0
    %619 = vmatpush1.bf16.msra.mxu0 %v449
    %620 = vmatprep.subr.bf16.mxu0 0
    %621 = vmatpush1.bf16.msra.mxu0 %v448
    %622 = vmatprep.subr.bf16.mxu0 0
    %623 = vmatpush2.bf16.msra.mxu0 0
    %624 = vmatprep.subr.bf16.mxu0 0
    %625 = vmatpush2.bf16.msra.mxu0 0
    %626 = vmatprep.subr.bf16.mxu0 0
    %627 = vmatpush2.bf16.msra.mxu0 0
    %628 = vmatprep.subr.bf16.mxu0 0
    %629 = vmatpush2.bf16.msra.mxu0 0
    %630 = vmatprep.subr.bf16.mxu0 0
    %631 = vmatpush2.bf16.msra.mxu0 0
    %632 = vmatprep.subr.bf16.mxu0 0
    %633 = vmatpush2.bf16.msra.mxu0 0
    %634 = vmatprep.subr.bf16.mxu0 0
    %635 = vmatpush2.bf16.msra.mxu0 0
    %636 = vmatprep.subr.bf16.mxu0 0
    %637 = vmatpush2.bf16.msra.mxu0 0
    %638 = vmatprep.mubr.bf16.mxu0 0
    %639 = vmatmul.mubr.bf16.gmra.mxu0 %v530
    %v640 = vpop.f32.mrf.mxu0
    %v641 = vadd.f32 %v576, %v640
    %v642 = vpop.f32.mrf.mxu0
    %v643 = vpop.f32.mrf.mxu0
    %v644 = vadd.f32 %v579, %v643
    %v645 = vpop.f32.mrf.mxu0
    %646 = vmatprep.mubr.bf16.mxu0 0
    %647 = vmatmul.mubr.bf16.gmra.mxu0 %v533
    %v648 = vpop.f32.mrf.mxu0
    %v649 = vadd.f32 %v584, %v648
    %v650 = vpop.f32.mrf.mxu0
    %v651 = vpop.f32.mrf.mxu0
    %v652 = vadd.f32 %v587, %v651
    %v653 = vpop.f32.mrf.mxu0
    %654 = vmatprep.mubr.bf16.mxu0 0
    %655 = vmatmul.mubr.bf16.gmra.mxu0 %v536
    %v656 = vpop.f32.mrf.mxu0
    %v657 = vadd.f32 %v592, %v656
    %v658 = vpop.f32.mrf.mxu0
    %v659 = vpop.f32.mrf.mxu0
    %v660 = vadd.f32 %v595, %v659
    %v661 = vpop.f32.mrf.mxu0
    %662 = vmatprep.mubr.bf16.mxu0 0
    %663 = vmatmul.mubr.bf16.gmra.mxu0 %v539
    %v664 = vpop.f32.mrf.mxu0
    %v665 = vadd.f32 %v600, %v664
    %v666 = vpop.f32.mrf.mxu0
    %v667 = vpop.f32.mrf.mxu0
    %v668 = vadd.f32 %v603, %v667
    %v669 = vpop.f32.mrf.mxu0
    %670 = vdwg.mxu0
    %v671 = vadd.f32 %v104, %v641
    %v672 = vadd.f32 %v105, %v644
    %v673 = vadd.f32 %v106, %v649
    %v674 = vadd.f32 %v107, %v652
    %v675 = vadd.f32 %v108, %v657
    %v676 = vadd.f32 %v109, %v660
    %v677 = vadd.f32 %v110, %v665
    %v678 = vadd.f32 %v111, %v668
    %vm679 = vcmp.gt.f32.partialorder %v671, 0.0
    %vm680 = vcmp.gt.f32.partialorder %v672, 0.0
    %vm681 = vcmp.gt.f32.partialorder %v673, 0.0
    %vm682 = vcmp.gt.f32.partialorder %v674, 0.0
    %vm683 = vcmp.gt.f32.partialorder %v675, 0.0
    %vm684 = vcmp.gt.f32.partialorder %v676, 0.0
    %vm685 = vcmp.gt.f32.partialorder %v677, 0.0
    %vm686 = vcmp.gt.f32.partialorder %v678, 0.0
    %v687 = vmin.f32 %v671, 0.0
    %v688 = vmin.f32 %v672, 0.0
    %v689 = vmin.f32 %v673, 0.0
    %v690 = vmin.f32 %v674, 0.0
    %v691 = vmin.f32 %v675, 0.0
    %v692 = vmin.f32 %v676, 0.0
    %v693 = vmin.f32 %v677, 0.0
    %v694 = vmin.f32 %v678, 0.0
    %v695 = vmul.f32 %v687, 1.442695
    %v696 = vpow.pop %v695
    %v697 = vmul.f32 %v688, 1.442695
    %v698 = vpow.pop %v697
    %v699 = vmul.f32 %v689, 1.442695
    %v700 = vpow.pop %v699
    %v701 = vmul.f32 %v690, 1.442695
    %v702 = vpow.pop %v701
    %v703 = vmul.f32 %v691, 1.442695
    %v704 = vpow.pop %v703
    %v705 = vmul.f32 %v692, 1.442695
    %v706 = vpow.pop %v705
    %v707 = vmul.f32 %v693, 1.442695
    %v708 = vpow.pop %v707
    %v709 = vmul.f32 %v694, 1.442695
    %v710 = vpow.pop %v709
    %v711 = vsub.f32 %v696, 1.0
    %v712 = vsub.f32 %v698, 1.0
    %v713 = vsub.f32 %v700, 1.0
    %v714 = vsub.f32 %v702, 1.0
    %v715 = vsub.f32 %v704, 1.0
    %v716 = vsub.f32 %v706, 1.0
    %v717 = vsub.f32 %v708, 1.0
    %v718 = vsub.f32 %v710, 1.0
    %v719 = vsel %vm679, %v671, %v711
    %v720 = vsel %vm680, %v672, %v712
    %v721 = vsel %vm681, %v673, %v713
    %v722 = vsel %vm682, %v674, %v714
    %v723 = vsel %vm683, %v675, %v715
    %v724 = vsel %vm684, %v676, %v716
    %v725 = vsel %vm685, %v677, %v717
    %v726 = vsel %vm686, %v678, %v718
    %v727 = vpack.c.bf16 %v720, %v719
    %v728 = vpack.c.bf16 %v722, %v721
    %v729 = vpack.c.bf16 %v724, %v723
    %v730 = vpack.c.bf16 %v726, %v725
    %v731 = vld [vmem:[%s6] sm:$0xf]
    %v732 = vld [vmem:[%s6 + $0x4] sm:$0xf]
    %v733 = vld [vmem:[%s6 + $0x8] sm:$0xf]
    %v734 = vld [vmem:[%s6 + $0xc] sm:$0xf]
    %v739 = vunpack.c.l.b16 %v731
    %v740 = vunpack.c.l.b16 %v732
    %v741 = vunpack.c.l.b16 %v733
    %v742 = vunpack.c.l.b16 %v734
    %v743 = vpack.c.b16 %v740, %v739
    %v744 = vpack.c.b16 %v742, %v741
    %vm747 = vcmask 261120
    %v749 = vsel %vm747, %v727, 0
    %v752 = vsel %vm747, %v728, 0
    %v755 = vsel %vm747, %v729, 0
    %v758 = vsel %vm747, %v730, 0
    %760 = vmatprep.subr.bf16.mxu0 0
    %761 = vmatpush1.bf16.msra.mxu0 0
    %762 = vmatprep.subr.bf16.mxu0 0
    %763 = vmatpush1.bf16.msra.mxu0 0
    %764 = vmatprep.subr.bf16.mxu0 0
    %765 = vmatpush1.bf16.msra.mxu0 0
    %766 = vmatprep.subr.bf16.mxu0 0
    %767 = vmatpush1.bf16.msra.mxu0 0
    %768 = vmatprep.subr.bf16.mxu0 0
    %769 = vmatpush1.bf16.msra.mxu0 0
    %770 = vmatprep.subr.bf16.mxu0 0
    %771 = vmatpush1.bf16.msra.mxu0 0
    %772 = vmatprep.subr.bf16.mxu0 0
    %773 = vmatpush1.bf16.msra.mxu0 %v744
    %774 = vmatprep.subr.bf16.mxu0 0
    %775 = vmatpush1.bf16.msra.mxu0 %v743
    %776 = vmatprep.subr.bf16.mxu0 0
    %777 = vmatpush2.bf16.msra.mxu0 0
    %778 = vmatprep.subr.bf16.mxu0 0
    %779 = vmatpush2.bf16.msra.mxu0 0
    %780 = vmatprep.subr.bf16.mxu0 0
    %781 = vmatpush2.bf16.msra.mxu0 0
    %782 = vmatprep.subr.bf16.mxu0 0
    %783 = vmatpush2.bf16.msra.mxu0 0
    %784 = vmatprep.subr.bf16.mxu0 0
    %785 = vmatpush2.bf16.msra.mxu0 0
    %786 = vmatprep.subr.bf16.mxu0 0
    %787 = vmatpush2.bf16.msra.mxu0 0
    %788 = vmatprep.subr.bf16.mxu0 0
    %789 = vmatpush2.bf16.msra.mxu0 0
    %790 = vmatprep.subr.bf16.mxu0 0
    %791 = vmatpush2.bf16.msra.mxu0 0
    %792 = vmatprep.mubr.bf16.mxu0 0
    %793 = vmatmul.mubr.bf16.gmra.mxu0 %v749
    %v794 = vpop.f32.mrf.mxu0
    %v795 = vadd.f32 0.0, %v794
    %v796 = vpop.f32.mrf.mxu0
    %v797 = vpop.f32.mrf.mxu0
    %v798 = vadd.f32 0.0, %v797
    %v799 = vpop.f32.mrf.mxu0
    %800 = vmatprep.mubr.bf16.mxu0 0
    %801 = vmatmul.mubr.bf16.gmra.mxu0 %v752
    %v802 = vpop.f32.mrf.mxu0
    %v803 = vadd.f32 0.0, %v802
    %v804 = vpop.f32.mrf.mxu0
    %v805 = vpop.f32.mrf.mxu0
    %v806 = vadd.f32 0.0, %v805
    %v807 = vpop.f32.mrf.mxu0
    %808 = vmatprep.mubr.bf16.mxu0 0
    %809 = vmatmul.mubr.bf16.gmra.mxu0 %v755
    %v810 = vpop.f32.mrf.mxu0
    %v811 = vadd.f32 0.0, %v810
    %v812 = vpop.f32.mrf.mxu0
    %v813 = vpop.f32.mrf.mxu0
    %v814 = vadd.f32 0.0, %v813
    %v815 = vpop.f32.mrf.mxu0
    %816 = vmatprep.mubr.bf16.mxu0 0
    %817 = vmatmul.mubr.bf16.gmra.mxu0 %v758
    %v818 = vpop.f32.mrf.mxu0
    %v819 = vadd.f32 0.0, %v818
    %v820 = vpop.f32.mrf.mxu0
    %v821 = vpop.f32.mrf.mxu0
    %v822 = vadd.f32 0.0, %v821
    %v823 = vpop.f32.mrf.mxu0
    %824 = vdwg.mxu0
    %v825 = vpack.c.bf16 %v798, %v795
    %v826 = vpack.c.bf16 %v806, %v803
    %v827 = vpack.c.bf16 %v814, %v811
    %v828 = vpack.c.bf16 %v822, %v819
    %v833 = vunpack.c.l.b16 %v825
    %v834 = vunpack.c.h.b16 %v825
    %v835 = vunpack.c.l.b16 %v826
    %v836 = vunpack.c.h.b16 %v826
    %v837 = vunpack.c.l.b16 %v827
    %v838 = vunpack.c.h.b16 %v827
    %v839 = vunpack.c.l.b16 %v828
    %v840 = vunpack.c.h.b16 %v828
    %v841 = vpack.c.b16 %v833, %v833
    %v842 = vpack.c.b16 %v834, %v834
    %v843 = vpack.c.b16 %v835, %v835
    %v844 = vpack.c.b16 %v836, %v836
    %v845 = vpack.c.b16 %v837, %v837
    %v846 = vpack.c.b16 %v838, %v838
    %v847 = vpack.c.b16 %v839, %v839
    %v848 = vpack.c.b16 %v840, %v840
    %vm857 = vcmask 519168
    %858 = vst.msk [vmem:[#allocation2] sm:$0xf] %vm857, %v841
    %859 = vst.msk [vmem:[#allocation2 + $0x4] sm:$0xf] %vm857, %v842
    %860 = vst.msk [vmem:[#allocation2 + $0x8] sm:$0xf] %vm857, %v843
    %861 = vst.msk [vmem:[#allocation2 + $0xc] sm:$0xf] %vm857, %v844
    %862 = vst.msk [vmem:[#allocation2 + $0x10] sm:$0xf] %vm857, %v845
    %863 = vst.msk [vmem:[#allocation2 + $0x14] sm:$0xf] %vm857, %v846
    %864 = vst.msk [vmem:[#allocation2 + $0x18] sm:$0xf] %vm857, %v847
    %865 = vst.msk [vmem:[#allocation2 + $0x1c] sm:$0xf] %vm857, %v848
    %v866 = vld [vmem:[%s6 + $0x10] sm:$0xf]
    %v867 = vld [vmem:[%s6 + $0x14] sm:$0xf]
    %v868 = vld [vmem:[%s6 + $0x18] sm:$0xf]
    %v869 = vld [vmem:[%s6 + $0x1c] sm:$0xf]
    %v874 = vunpack.c.l.b16 %v866
    %v875 = vunpack.c.l.b16 %v867
    %v876 = vunpack.c.l.b16 %v868
    %v877 = vunpack.c.l.b16 %v869
    %v878 = vpack.c.b16 %v875, %v874
    %v879 = vpack.c.b16 %v877, %v876
    %882 = vmatprep.subr.bf16.mxu0 0
    %883 = vmatpush1.bf16.msra.mxu0 0
    %884 = vmatprep.subr.bf16.mxu0 0
    %885 = vmatpush1.bf16.msra.mxu0 0
    %886 = vmatprep.subr.bf16.mxu0 0
    %887 = vmatpush1.bf16.msra.mxu0 0
    %888 = vmatprep.subr.bf16.mxu0 0
    %889 = vmatpush1.bf16.msra.mxu0 0
    %890 = vmatprep.subr.bf16.mxu0 0
    %891 = vmatpush1.bf16.msra.mxu0 0
    %892 = vmatprep.subr.bf16.mxu0 0
    %893 = vmatpush1.bf16.msra.mxu0 0
    %894 = vmatprep.subr.bf16.mxu0 0
    %895 = vmatpush1.bf16.msra.mxu0 %v879
    %896 = vmatprep.subr.bf16.mxu0 0
    %897 = vmatpush1.bf16.msra.mxu0 %v878
    %898 = vmatprep.subr.bf16.mxu0 0
    %899 = vmatpush2.bf16.msra.mxu0 0
    %900 = vmatprep.subr.bf16.mxu0 0
    %901 = vmatpush2.bf16.msra.mxu0 0
    %902 = vmatprep.subr.bf16.mxu0 0
    %903 = vmatpush2.bf16.msra.mxu0 0
    %904 = vmatprep.subr.bf16.mxu0 0
    %905 = vmatpush2.bf16.msra.mxu0 0
    %906 = vmatprep.subr.bf16.mxu0 0
    %907 = vmatpush2.bf16.msra.mxu0 0
    %908 = vmatprep.subr.bf16.mxu0 0
    %909 = vmatpush2.bf16.msra.mxu0 0
    %910 = vmatprep.subr.bf16.mxu0 0
    %911 = vmatpush2.bf16.msra.mxu0 0
    %912 = vmatprep.subr.bf16.mxu0 0
    %913 = vmatpush2.bf16.msra.mxu0 0
    %914 = vmatprep.mubr.bf16.mxu0 0
    %915 = vmatmul.mubr.bf16.gmra.mxu0 %v749
    %v916 = vpop.f32.mrf.mxu0
    %v917 = vadd.f32 0.0, %v916
    %v918 = vpop.f32.mrf.mxu0
    %v919 = vpop.f32.mrf.mxu0
    %v920 = vadd.f32 0.0, %v919
    %v921 = vpop.f32.mrf.mxu0
    %922 = vmatprep.mubr.bf16.mxu0 0
    %923 = vmatmul.mubr.bf16.gmra.mxu0 %v752
    %v924 = vpop.f32.mrf.mxu0
    %v925 = vadd.f32 0.0, %v924
    %v926 = vpop.f32.mrf.mxu0
    %v927 = vpop.f32.mrf.mxu0
    %v928 = vadd.f32 0.0, %v927
    %v929 = vpop.f32.mrf.mxu0
    %930 = vmatprep.mubr.bf16.mxu0 0
    %931 = vmatmul.mubr.bf16.gmra.mxu0 %v755
    %v932 = vpop.f32.mrf.mxu0
    %v933 = vadd.f32 0.0, %v932
    %v934 = vpop.f32.mrf.mxu0
    %v935 = vpop.f32.mrf.mxu0
    %v936 = vadd.f32 0.0, %v935
    %v937 = vpop.f32.mrf.mxu0
    %938 = vmatprep.mubr.bf16.mxu0 0
    %939 = vmatmul.mubr.bf16.gmra.mxu0 %v758
    %v940 = vpop.f32.mrf.mxu0
    %v941 = vadd.f32 0.0, %v940
    %v942 = vpop.f32.mrf.mxu0
    %v943 = vpop.f32.mrf.mxu0
    %v944 = vadd.f32 0.0, %v943
    %v945 = vpop.f32.mrf.mxu0
    %946 = vdwg.mxu0
    %v947 = vpack.c.bf16 %v920, %v917
    %v948 = vpack.c.bf16 %v928, %v925
    %v949 = vpack.c.bf16 %v936, %v933
    %v950 = vpack.c.bf16 %v944, %v941
    %v955 = vunpack.c.l.b16 %v947
    %v956 = vunpack.c.h.b16 %v947
    %v957 = vunpack.c.l.b16 %v948
    %v958 = vunpack.c.h.b16 %v948
    %v959 = vunpack.c.l.b16 %v949
    %v960 = vunpack.c.h.b16 %v949
    %v961 = vunpack.c.l.b16 %v950
    %v962 = vunpack.c.h.b16 %v950
    %v963 = vpack.c.b16 %v955, %v955
    %v964 = vpack.c.b16 %v956, %v956
    %v965 = vpack.c.b16 %v957, %v957
    %v966 = vpack.c.b16 %v958, %v958
    %v967 = vpack.c.b16 %v959, %v959
    %v968 = vpack.c.b16 %v960, %v960
    %v969 = vpack.c.b16 %v961, %v961
    %v970 = vpack.c.b16 %v962, %v962
    %979 = vst.msk [vmem:[#allocation2 + $0x20] sm:$0xf] %vm857, %v963
    %980 = vst.msk [vmem:[#allocation2 + $0x24] sm:$0xf] %vm857, %v964
    %981 = vst.msk [vmem:[#allocation2 + $0x28] sm:$0xf] %vm857, %v965
    %982 = vst.msk [vmem:[#allocation2 + $0x2c] sm:$0xf] %vm857, %v966
    %983 = vst.msk [vmem:[#allocation2 + $0x30] sm:$0xf] %vm857, %v967
    %984 = vst.msk [vmem:[#allocation2 + $0x34] sm:$0xf] %vm857, %v968
    %985 = vst.msk [vmem:[#allocation2 + $0x38] sm:$0xf] %vm857, %v969
    %986 = vst.msk [vmem:[#allocation2 + $0x3c] sm:$0xf] %vm857, %v970
    %v987 = vld [vmem:[%s6 + $0x20] sm:$0xf]
    %v988 = vld [vmem:[%s6 + $0x24] sm:$0xf]
    %v989 = vld [vmem:[%s6 + $0x28] sm:$0xf]
    %v990 = vld [vmem:[%s6 + $0x2c] sm:$0xf]
    %v995 = vunpack.c.l.b16 %v987
    %v996 = vunpack.c.l.b16 %v988
    %v997 = vunpack.c.l.b16 %v989
    %v998 = vunpack.c.l.b16 %v990
    %v999 = vpack.c.b16 %v996, %v995
    %v1000 = vpack.c.b16 %v998, %v997
    %1003 = vmatprep.subr.bf16.mxu0 0
    %1004 = vmatpush1.bf16.msra.mxu0 0
    %1005 = vmatprep.subr.bf16.mxu0 0
    %1006 = vmatpush1.bf16.msra.mxu0 0
    %1007 = vmatprep.subr.bf16.mxu0 0
    %1008 = vmatpush1.bf16.msra.mxu0 0
    %1009 = vmatprep.subr.bf16.mxu0 0
    %1010 = vmatpush1.bf16.msra.mxu0 0
    %1011 = vmatprep.subr.bf16.mxu0 0
    %1012 = vmatpush1.bf16.msra.mxu0 0
    %1013 = vmatprep.subr.bf16.mxu0 0
    %1014 = vmatpush1.bf16.msra.mxu0 0
    %1015 = vmatprep.subr.bf16.mxu0 0
    %1016 = vmatpush1.bf16.msra.mxu0 %v1000
    %1017 = vmatprep.subr.bf16.mxu0 0
    %1018 = vmatpush1.bf16.msra.mxu0 %v999
    %1019 = vmatprep.subr.bf16.mxu0 0
    %1020 = vmatpush2.bf16.msra.mxu0 0
    %1021 = vmatprep.subr.bf16.mxu0 0
    %1022 = vmatpush2.bf16.msra.mxu0 0
    %1023 = vmatprep.subr.bf16.mxu0 0
    %1024 = vmatpush2.bf16.msra.mxu0 0
    %1025 = vmatprep.subr.bf16.mxu0 0
    %1026 = vmatpush2.bf16.msra.mxu0 0
    %1027 = vmatprep.subr.bf16.mxu0 0
    %1028 = vmatpush2.bf16.msra.mxu0 0
    %1029 = vmatprep.subr.bf16.mxu0 0
    %1030 = vmatpush2.bf16.msra.mxu0 0
    %1031 = vmatprep.subr.bf16.mxu0 0
    %1032 = vmatpush2.bf16.msra.mxu0 0
    %1033 = vmatprep.subr.bf16.mxu0 0
    %1034 = vmatpush2.bf16.msra.mxu0 0
    %1035 = vmatprep.mubr.bf16.mxu0 0
    %1036 = vmatmul.mubr.bf16.gmra.mxu0 %v749
    %v1037 = vpop.f32.mrf.mxu0
    %v1038 = vadd.f32 0.0, %v1037
    %v1039 = vpop.f32.mrf.mxu0
    %v1040 = vpop.f32.mrf.mxu0
    %v1041 = vadd.f32 0.0, %v1040
    %v1042 = vpop.f32.mrf.mxu0
    %1043 = vmatprep.mubr.bf16.mxu0 0
    %1044 = vmatmul.mubr.bf16.gmra.mxu0 %v752
    %v1045 = vpop.f32.mrf.mxu0
    %v1046 = vadd.f32 0.0, %v1045
    %v1047 = vpop.f32.mrf.mxu0
    %v1048 = vpop.f32.mrf.mxu0
    %v1049 = vadd.f32 0.0, %v1048
    %v1050 = vpop.f32.mrf.mxu0
    %1051 = vmatprep.mubr.bf16.mxu0 0
    %1052 = vmatmul.mubr.bf16.gmra.mxu0 %v755
    %v1053 = vpop.f32.mrf.mxu0
    %v1054 = vadd.f32 0.0, %v1053
    %v1055 = vpop.f32.mrf.mxu0
    %v1056 = vpop.f32.mrf.mxu0
    %v1057 = vadd.f32 0.0, %v1056
    %v1058 = vpop.f32.mrf.mxu0
    %1059 = vmatprep.mubr.bf16.mxu0 0
    %1060 = vmatmul.mubr.bf16.gmra.mxu0 %v758
    %v1061 = vpop.f32.mrf.mxu0
    %v1062 = vadd.f32 0.0, %v1061
    %v1063 = vpop.f32.mrf.mxu0
    %v1064 = vpop.f32.mrf.mxu0
    %v1065 = vadd.f32 0.0, %v1064
    %v1066 = vpop.f32.mrf.mxu0
    %1067 = vdwg.mxu0
    %v1068 = vpack.c.bf16 %v1041, %v1038
    %v1069 = vpack.c.bf16 %v1049, %v1046
    %v1070 = vpack.c.bf16 %v1057, %v1054
    %v1071 = vpack.c.bf16 %v1065, %v1062
    %v1076 = vunpack.c.l.b16 %v1068
    %v1077 = vunpack.c.h.b16 %v1068
    %v1078 = vunpack.c.l.b16 %v1069
    %v1079 = vunpack.c.h.b16 %v1069
    %v1080 = vunpack.c.l.b16 %v1070
    %v1081 = vunpack.c.h.b16 %v1070
    %v1082 = vunpack.c.l.b16 %v1071
    %v1083 = vunpack.c.h.b16 %v1071
    %v1084 = vpack.c.b16 %v1076, %v1076
    %v1085 = vpack.c.b16 %v1077, %v1077
    %v1086 = vpack.c.b16 %v1078, %v1078
    %v1087 = vpack.c.b16 %v1079, %v1079
    %v1088 = vpack.c.b16 %v1080, %v1080
    %v1089 = vpack.c.b16 %v1081, %v1081
    %v1090 = vpack.c.b16 %v1082, %v1082
    %v1091 = vpack.c.b16 %v1083, %v1083
    %1100 = vst.msk [vmem:[#allocation2 + $0x40] sm:$0xf] %vm857, %v1084
    %1101 = vst.msk [vmem:[#allocation2 + $0x44] sm:$0xf] %vm857, %v1085
    %1102 = vst.msk [vmem:[#allocation2 + $0x48] sm:$0xf] %vm857, %v1086
    %1103 = vst.msk [vmem:[#allocation2 + $0x4c] sm:$0xf] %vm857, %v1087
    %1104 = vst.msk [vmem:[#allocation2 + $0x50] sm:$0xf] %vm857, %v1088
    %1105 = vst.msk [vmem:[#allocation2 + $0x54] sm:$0xf] %vm857, %v1089
    %1106 = vst.msk [vmem:[#allocation2 + $0x58] sm:$0xf] %vm857, %v1090
    %1107 = vst.msk [vmem:[#allocation2 + $0x5c] sm:$0xf] %vm857, %v1091
    %v1108 = vld [vmem:[%s6 + $0x30] sm:$0xf]
    %v1109 = vld [vmem:[%s6 + $0x34] sm:$0xf]
    %v1110 = vld [vmem:[%s6 + $0x38] sm:$0xf]
    %v1111 = vld [vmem:[%s6 + $0x3c] sm:$0xf]
    %v1116 = vunpack.c.l.b16 %v1108
    %v1117 = vunpack.c.l.b16 %v1109
    %v1118 = vunpack.c.l.b16 %v1110
    %v1119 = vunpack.c.l.b16 %v1111
    %v1120 = vpack.c.b16 %v1117, %v1116
    %v1121 = vpack.c.b16 %v1119, %v1118
    %1124 = vmatprep.subr.bf16.mxu0 0
    %1125 = vmatpush1.bf16.msra.mxu0 0
    %1126 = vmatprep.subr.bf16.mxu0 0
    %1127 = vmatpush1.bf16.msra.mxu0 0
    %1128 = vmatprep.subr.bf16.mxu0 0
    %1129 = vmatpush1.bf16.msra.mxu0 0
    %1130 = vmatprep.subr.bf16.mxu0 0
    %1131 = vmatpush1.bf16.msra.mxu0 0
    %1132 = vmatprep.subr.bf16.mxu0 0
    %1133 = vmatpush1.bf16.msra.mxu0 0
    %1134 = vmatprep.subr.bf16.mxu0 0
    %1135 = vmatpush1.bf16.msra.mxu0 0
    %1136 = vmatprep.subr.bf16.mxu0 0
    %1137 = vmatpush1.bf16.msra.mxu0 %v1121
    %1138 = vmatprep.subr.bf16.mxu0 0
    %1139 = vmatpush1.bf16.msra.mxu0 %v1120
    %1140 = vmatprep.subr.bf16.mxu0 0
    %1141 = vmatpush2.bf16.msra.mxu0 0
    %1142 = vmatprep.subr.bf16.mxu0 0
    %1143 = vmatpush2.bf16.msra.mxu0 0
    %1144 = vmatprep.subr.bf16.mxu0 0
    %1145 = vmatpush2.bf16.msra.mxu0 0
    %1146 = vmatprep.subr.bf16.mxu0 0
    %1147 = vmatpush2.bf16.msra.mxu0 0
    %1148 = vmatprep.subr.bf16.mxu0 0
    %1149 = vmatpush2.bf16.msra.mxu0 0
    %1150 = vmatprep.subr.bf16.mxu0 0
    %1151 = vmatpush2.bf16.msra.mxu0 0
    %1152 = vmatprep.subr.bf16.mxu0 0
    %1153 = vmatpush2.bf16.msra.mxu0 0
    %1154 = vmatprep.subr.bf16.mxu0 0
    %1155 = vmatpush2.bf16.msra.mxu0 0
    %1156 = vmatprep.mubr.bf16.mxu0 0
    %1157 = vmatmul.mubr.bf16.gmra.mxu0 %v749
    %v1158 = vpop.f32.mrf.mxu0
    %v1159 = vadd.f32 0.0, %v1158
    %v1160 = vpop.f32.mrf.mxu0
    %v1161 = vpop.f32.mrf.mxu0
    %v1162 = vadd.f32 0.0, %v1161
    %v1163 = vpop.f32.mrf.mxu0
    %1164 = vmatprep.mubr.bf16.mxu0 0
    %1165 = vmatmul.mubr.bf16.gmra.mxu0 %v752
    %v1166 = vpop.f32.mrf.mxu0
    %v1167 = vadd.f32 0.0, %v1166
    %v1168 = vpop.f32.mrf.mxu0
    %v1169 = vpop.f32.mrf.mxu0
    %v1170 = vadd.f32 0.0, %v1169
    %v1171 = vpop.f32.mrf.mxu0
    %1172 = vmatprep.mubr.bf16.mxu0 0
    %1173 = vmatmul.mubr.bf16.gmra.mxu0 %v755
    %v1174 = vpop.f32.mrf.mxu0
    %v1175 = vadd.f32 0.0, %v1174
    %v1176 = vpop.f32.mrf.mxu0
    %v1177 = vpop.f32.mrf.mxu0
    %v1178 = vadd.f32 0.0, %v1177
    %v1179 = vpop.f32.mrf.mxu0
    %1180 = vmatprep.mubr.bf16.mxu0 0
    %1181 = vmatmul.mubr.bf16.gmra.mxu0 %v758
    %v1182 = vpop.f32.mrf.mxu0
    %v1183 = vadd.f32 0.0, %v1182
    %v1184 = vpop.f32.mrf.mxu0
    %v1185 = vpop.f32.mrf.mxu0
    %v1186 = vadd.f32 0.0, %v1185
    %v1187 = vpop.f32.mrf.mxu0
    %1188 = vdwg.mxu0
    %v1189 = vpack.c.bf16 %v1162, %v1159
    %v1190 = vpack.c.bf16 %v1170, %v1167
    %v1191 = vpack.c.bf16 %v1178, %v1175
    %v1192 = vpack.c.bf16 %v1186, %v1183
    %v1197 = vunpack.c.l.b16 %v1189
    %v1198 = vunpack.c.h.b16 %v1189
    %v1199 = vunpack.c.l.b16 %v1190
    %v1200 = vunpack.c.h.b16 %v1190
    %v1201 = vunpack.c.l.b16 %v1191
    %v1202 = vunpack.c.h.b16 %v1191
    %v1203 = vunpack.c.l.b16 %v1192
    %v1204 = vunpack.c.h.b16 %v1192
    %v1205 = vpack.c.b16 %v1197, %v1197
    %v1206 = vpack.c.b16 %v1198, %v1198
    %v1207 = vpack.c.b16 %v1199, %v1199
    %v1208 = vpack.c.b16 %v1200, %v1200
    %v1209 = vpack.c.b16 %v1201, %v1201
    %v1210 = vpack.c.b16 %v1202, %v1202
    %v1211 = vpack.c.b16 %v1203, %v1203
    %v1212 = vpack.c.b16 %v1204, %v1204
    %1221 = vst.msk [vmem:[#allocation2 + $0x60] sm:$0xf] %vm857, %v1205
    %1222 = vst.msk [vmem:[#allocation2 + $0x64] sm:$0xf] %vm857, %v1206
    %1223 = vst.msk [vmem:[#allocation2 + $0x68] sm:$0xf] %vm857, %v1207
    %1224 = vst.msk [vmem:[#allocation2 + $0x6c] sm:$0xf] %vm857, %v1208
    %1225 = vst.msk [vmem:[#allocation2 + $0x70] sm:$0xf] %vm857, %v1209
    %1226 = vst.msk [vmem:[#allocation2 + $0x74] sm:$0xf] %vm857, %v1210
    %1227 = vst.msk [vmem:[#allocation2 + $0x78] sm:$0xf] %vm857, %v1211
    %1228 = vst.msk [vmem:[#allocation2 + $0x7c] sm:$0xf] %vm857, %v1212
    %v1229 = vld [vmem:[%s6 + $0x40] sm:$0xf]
    %v1230 = vld [vmem:[%s6 + $0x44] sm:$0xf]
    %v1231 = vld [vmem:[%s6 + $0x48] sm:$0xf]
    %v1232 = vld [vmem:[%s6 + $0x4c] sm:$0xf]
    %v1237 = vunpack.c.l.b16 %v1229
    %v1238 = vunpack.c.l.b16 %v1230
    %v1239 = vunpack.c.l.b16 %v1231
    %v1240 = vunpack.c.l.b16 %v1232
    %v1241 = vpack.c.b16 %v1238, %v1237
    %v1242 = vpack.c.b16 %v1240, %v1239
    %1245 = vmatprep.subr.bf16.mxu0 0
    %1246 = vmatpush1.bf16.msra.mxu0 0
    %1247 = vmatprep.subr.bf16.mxu0 0
    %1248 = vmatpush1.bf16.msra.mxu0 0
    %1249 = vmatprep.subr.bf16.mxu0 0
    %1250 = vmatpush1.bf16.msra.mxu0 0
    %1251 = vmatprep.subr.bf16.mxu0 0
    %1252 = vmatpush1.bf16.msra.mxu0 0
    %1253 = vmatprep.subr.bf16.mxu0 0
    %1254 = vmatpush1.bf16.msra.mxu0 0
    %1255 = vmatprep.subr.bf16.mxu0 0
    %1256 = vmatpush1.bf16.msra.mxu0 0
    %1257 = vmatprep.subr.bf16.mxu0 0
    %1258 = vmatpush1.bf16.msra.mxu0 %v1242
    %1259 = vmatprep.subr.bf16.mxu0 0
    %1260 = vmatpush1.bf16.msra.mxu0 %v1241
    %1261 = vmatprep.subr.bf16.mxu0 0
    %1262 = vmatpush2.bf16.msra.mxu0 0
    %1263 = vmatprep.subr.bf16.mxu0 0
    %1264 = vmatpush2.bf16.msra.mxu0 0
    %1265 = vmatprep.subr.bf16.mxu0 0
    %1266 = vmatpush2.bf16.msra.mxu0 0
    %1267 = vmatprep.subr.bf16.mxu0 0
    %1268 = vmatpush2.bf16.msra.mxu0 0
    %1269 = vmatprep.subr.bf16.mxu0 0
    %1270 = vmatpush2.bf16.msra.mxu0 0
    %1271 = vmatprep.subr.bf16.mxu0 0
    %1272 = vmatpush2.bf16.msra.mxu0 0
    %1273 = vmatprep.subr.bf16.mxu0 0
    %1274 = vmatpush2.bf16.msra.mxu0 0
    %1275 = vmatprep.subr.bf16.mxu0 0
    %1276 = vmatpush2.bf16.msra.mxu0 0
    %1277 = vmatprep.mubr.bf16.mxu0 0
    %1278 = vmatmul.mubr.bf16.gmra.mxu0 %v749
    %v1279 = vpop.f32.mrf.mxu0
    %v1280 = vadd.f32 0.0, %v1279
    %v1281 = vpop.f32.mrf.mxu0
    %v1282 = vpop.f32.mrf.mxu0
    %v1283 = vadd.f32 0.0, %v1282
    %v1284 = vpop.f32.mrf.mxu0
    %1285 = vmatprep.mubr.bf16.mxu0 0
    %1286 = vmatmul.mubr.bf16.gmra.mxu0 %v752
    %v1287 = vpop.f32.mrf.mxu0
    %v1288 = vadd.f32 0.0, %v1287
    %v1289 = vpop.f32.mrf.mxu0
    %v1290 = vpop.f32.mrf.mxu0
    %v1291 = vadd.f32 0.0, %v1290
    %v1292 = vpop.f32.mrf.mxu0
    %1293 = vmatprep.mubr.bf16.mxu0 0
    %1294 = vmatmul.mubr.bf16.gmra.mxu0 %v755
    %v1295 = vpop.f32.mrf.mxu0
    %v1296 = vadd.f32 0.0, %v1295
    %v1297 = vpop.f32.mrf.mxu0
    %v1298 = vpop.f32.mrf.mxu0
    %v1299 = vadd.f32 0.0, %v1298
    %v1300 = vpop.f32.mrf.mxu0
    %1301 = vmatprep.mubr.bf16.mxu0 0
    %1302 = vmatmul.mubr.bf16.gmra.mxu0 %v758
    %v1303 = vpop.f32.mrf.mxu0
    %v1304 = vadd.f32 0.0, %v1303
    %v1305 = vpop.f32.mrf.mxu0
    %v1306 = vpop.f32.mrf.mxu0
    %v1307 = vadd.f32 0.0, %v1306
    %v1308 = vpop.f32.mrf.mxu0
    %1309 = vdwg.mxu0
    %v1310 = vpack.c.bf16 %v1283, %v1280
    %v1311 = vpack.c.bf16 %v1291, %v1288
    %v1312 = vpack.c.bf16 %v1299, %v1296
    %v1313 = vpack.c.bf16 %v1307, %v1304
    %v1318 = vunpack.c.l.b16 %v1310
    %v1319 = vunpack.c.h.b16 %v1310
    %v1320 = vunpack.c.l.b16 %v1311
    %v1321 = vunpack.c.h.b16 %v1311
    %v1322 = vunpack.c.l.b16 %v1312
    %v1323 = vunpack.c.h.b16 %v1312
    %v1324 = vunpack.c.l.b16 %v1313
    %v1325 = vunpack.c.h.b16 %v1313
    %v1326 = vpack.c.b16 %v1318, %v1318
    %v1327 = vpack.c.b16 %v1319, %v1319
    %v1328 = vpack.c.b16 %v1320, %v1320
    %v1329 = vpack.c.b16 %v1321, %v1321
    %v1330 = vpack.c.b16 %v1322, %v1322
    %v1331 = vpack.c.b16 %v1323, %v1323
    %v1332 = vpack.c.b16 %v1324, %v1324
    %v1333 = vpack.c.b16 %v1325, %v1325
    %1342 = vst.msk [vmem:[#allocation2 + $0x80] sm:$0xf] %vm857, %v1326
    %1343 = vst.msk [vmem:[#allocation2 + $0x84] sm:$0xf] %vm857, %v1327
    %1344 = vst.msk [vmem:[#allocation2 + $0x88] sm:$0xf] %vm857, %v1328
    %1345 = vst.msk [vmem:[#allocation2 + $0x8c] sm:$0xf] %vm857, %v1329
    %1346 = vst.msk [vmem:[#allocation2 + $0x90] sm:$0xf] %vm857, %v1330
    %1347 = vst.msk [vmem:[#allocation2 + $0x94] sm:$0xf] %vm857, %v1331
    %1348 = vst.msk [vmem:[#allocation2 + $0x98] sm:$0xf] %vm857, %v1332
    %1349 = vst.msk [vmem:[#allocation2 + $0x9c] sm:$0xf] %vm857, %v1333
    %v1350 = vld [vmem:[%s7] sm:$0xff]
    %v1351 = vld [vmem:[%s7 + $0x8] sm:$0xff]
    %v1352 = vld [vmem:[%s7 + $0x10] sm:$0xff]
    %v1353 = vld [vmem:[%s7 + $0x18] sm:$0xff]
    %v1354 = vld [vmem:[%s8] sm:$0x1]
    %v1356 = vlaneseq
    %v1357 = vshrl.u32 %v1356, 7
    %v1358 = vsub.s32 0, %v1357
    %v1359 = vrot.slane %v1354, %v1358
    %v1362 = vsel %vm747, %v719, 0
    %v1365 = vsel %vm747, %v720, 0
    %v1368 = vsel %vm747, %v721, 0
    %v1371 = vsel %vm747, %v722, 0
    %v1374 = vsel %vm747, %v723, 0
    %v1377 = vsel %vm747, %v724, 0
    %v1380 = vsel %vm747, %v725, 0
    %v1383 = vsel %vm747, %v726, 0
    %1385 = vmatprep.subr.mxu0 0.0
    %1386 = vmatpush1.msra.mxu0 0.0
    %1387 = vmatprep.subr.mxu0 0.0
    %1388 = vmatpush1.msra.mxu0 0.0
    %1389 = vmatprep.subr.mxu0 0.0
    %1390 = vmatpush1.msra.mxu0 0.0
    %1391 = vmatprep.subr.mxu0 0.0
    %1392 = vmatpush1.msra.mxu0 0.0
    %1393 = vmatprep.subr.mxu0 0.0
    %1394 = vmatpush1.msra.mxu0 0.0
    %1395 = vmatprep.subr.mxu0 0.0
    %1396 = vmatpush1.msra.mxu0 0.0
    %1397 = vmatprep.subr.mxu0 0.0
    %1398 = vmatpush1.msra.mxu0 0.0
    %1399 = vmatprep.subr.mxu0 0.0
    %1400 = vmatpush1.msra.mxu0 0.0
    %1401 = vmatprep.subr.mxu0 0.0
    %1402 = vmatpush1.msra.mxu0 0.0
    %1403 = vmatprep.subr.mxu0 0.0
    %1404 = vmatpush1.msra.mxu0 0.0
    %1405 = vmatprep.subr.mxu0 0.0
    %1406 = vmatpush1.msra.mxu0 0.0
    %1407 = vmatprep.subr.mxu0 0.0
    %1408 = vmatpush1.msra.mxu0 0.0
    %1409 = vmatprep.subr.mxu0 0.0
    %1410 = vmatpush1.msra.mxu0 %v1353
    %1411 = vmatprep.subr.mxu0 0.0
    %1412 = vmatpush1.msra.mxu0 %v1352
    %1413 = vmatprep.subr.mxu0 0.0
    %1414 = vmatpush1.msra.mxu0 %v1351
    %1415 = vmatprep.subr.mxu0 0.0
    %1416 = vmatpush1.msra.mxu0 %v1350
    %1417 = vmatprep.subr.mxu0 0.0
    %1418 = vmatpush2.msra.mxu0 0.0
    %1419 = vmatprep.subr.mxu0 0.0
    %1420 = vmatpush2.msra.mxu0 0.0
    %1421 = vmatprep.subr.mxu0 0.0
    %1422 = vmatpush2.msra.mxu0 0.0
    %1423 = vmatprep.subr.mxu0 0.0
    %1424 = vmatpush2.msra.mxu0 0.0
    %1425 = vmatprep.subr.mxu0 0.0
    %1426 = vmatpush2.msra.mxu0 0.0
    %1427 = vmatprep.subr.mxu0 0.0
    %1428 = vmatpush2.msra.mxu0 0.0
    %1429 = vmatprep.subr.mxu0 0.0
    %1430 = vmatpush2.msra.mxu0 0.0
    %1431 = vmatprep.subr.mxu0 0.0
    %1432 = vmatpush2.msra.mxu0 0.0
    %1433 = vmatprep.subr.mxu0 0.0
    %1434 = vmatpush2.msra.mxu0 0.0
    %1435 = vmatprep.subr.mxu0 0.0
    %1436 = vmatpush2.msra.mxu0 0.0
    %1437 = vmatprep.subr.mxu0 0.0
    %1438 = vmatpush2.msra.mxu0 0.0
    %1439 = vmatprep.subr.mxu0 0.0
    %1440 = vmatpush2.msra.mxu0 0.0
    %1441 = vmatprep.subr.mxu0 0.0
    %1442 = vmatpush2.msra.mxu0 0.0
    %1443 = vmatprep.subr.mxu0 0.0
    %1444 = vmatpush2.msra.mxu0 0.0
    %1445 = vmatprep.subr.mxu0 0.0
    %1446 = vmatpush2.msra.mxu0 0.0
    %1447 = vmatprep.subr.mxu0 0.0
    %1448 = vmatpush2.msra.mxu0 0.0
    %1449 = vmatprep.mubr.f32.mxu0 0.0
    %1450 = vmatmul.mubr.f32.gmra.mxu0 %v1362
    %v1451 = vpop.f32.mrf.mxu0
    %v1452 = vadd.f32 %v1359, %v1451
    %v1453 = vpop.f32.mrf.mxu0
    %1454 = vmatprep.mubr.f32.mxu0 0.0
    %1455 = vmatmul.mubr.f32.gmra.mxu0 %v1365
    %v1456 = vpop.f32.mrf.mxu0
    %v1457 = vadd.f32 %v1359, %v1456
    %v1458 = vpop.f32.mrf.mxu0
    %1459 = vmatprep.mubr.f32.mxu0 0.0
    %1460 = vmatmul.mubr.f32.gmra.mxu0 %v1368
    %v1461 = vpop.f32.mrf.mxu0
    %v1462 = vadd.f32 %v1359, %v1461
    %v1463 = vpop.f32.mrf.mxu0
    %1464 = vmatprep.mubr.f32.mxu0 0.0
    %1465 = vmatmul.mubr.f32.gmra.mxu0 %v1371
    %v1466 = vpop.f32.mrf.mxu0
    %v1467 = vadd.f32 %v1359, %v1466
    %v1468 = vpop.f32.mrf.mxu0
    %1469 = vmatprep.mubr.f32.mxu0 0.0
    %1470 = vmatmul.mubr.f32.gmra.mxu0 %v1374
    %v1471 = vpop.f32.mrf.mxu0
    %v1472 = vadd.f32 %v1359, %v1471
    %v1473 = vpop.f32.mrf.mxu0
    %1474 = vmatprep.mubr.f32.mxu0 0.0
    %1475 = vmatmul.mubr.f32.gmra.mxu0 %v1377
    %v1476 = vpop.f32.mrf.mxu0
    %v1477 = vadd.f32 %v1359, %v1476
    %v1478 = vpop.f32.mrf.mxu0
    %1479 = vmatprep.mubr.f32.mxu0 0.0
    %1480 = vmatmul.mubr.f32.gmra.mxu0 %v1380
    %v1481 = vpop.f32.mrf.mxu0
    %v1482 = vadd.f32 %v1359, %v1481
    %v1483 = vpop.f32.mrf.mxu0
    %1484 = vmatprep.mubr.f32.mxu0 0.0
    %1485 = vmatmul.mubr.f32.gmra.mxu0 %v1383
    %v1486 = vpop.f32.mrf.mxu0
    %v1487 = vadd.f32 %v1359, %v1486
    %v1488 = vpop.f32.mrf.mxu0
    %1489 = vdwg.mxu0
    %v1490 = vld [vmem:[%s0] sm:$0xff]
    %v1491 = vld [vmem:[%s0 + $0x8] sm:$0xf]
    %v1492 = vld [vmem:[%s0 + $0xc] sm:$0xff]
    %v1493 = vld [vmem:[%s0 + $0x14] sm:$0xf]
    %v1494 = vld [vmem:[%s0 + $0x18] sm:$0xff]
    %v1495 = vld [vmem:[%s0 + $0x20] sm:$0xf]
    %v1496 = vld [vmem:[%s0 + $0x24] sm:$0xff]
    %v1497 = vld [vmem:[%s0 + $0x2c] sm:$0xf]
    %v1498 = vld [vmem:[%s0 + $0x30] sm:$0xff]
    %v1499 = vld [vmem:[%s0 + $0x38] sm:$0xf]
    %v1500 = vld [vmem:[%s0 + $0x3c] sm:$0xff]
    %v1501 = vld [vmem:[%s0 + $0x44] sm:$0xf]
    %v1502 = vld [vmem:[%s0 + $0x48] sm:$0xff]
    %v1503 = vld [vmem:[%s0 + $0x50] sm:$0xf]
    %v1504 = vld [vmem:[%s0 + $0x54] sm:$0xff]
    %v1505 = vld [vmem:[%s0 + $0x5c] sm:$0xf]
    %v1506 = vld [vmem:[#allocation2] sm:$0xf]
    %v1507 = vld [vmem:[#allocation2 + $0x4] sm:$0xf]
    %v1508 = vld [vmem:[#allocation2 + $0x8] sm:$0xf]
    %v1509 = vld [vmem:[#allocation2 + $0xc] sm:$0xf]
    %v1510 = vld [vmem:[#allocation2 + $0x10] sm:$0xf]
    %v1511 = vld [vmem:[#allocation2 + $0x14] sm:$0xf]
    %v1512 = vld [vmem:[#allocation2 + $0x18] sm:$0xf]
    %v1513 = vld [vmem:[#allocation2 + $0x1c] sm:$0xf]
    %v1514 = vld [vmem:[#allocation2 + $0x20] sm:$0xf]
    %v1515 = vld [vmem:[#allocation2 + $0x24] sm:$0xf]
    %v1516 = vld [vmem:[#allocation2 + $0x28] sm:$0xf]
    %v1517 = vld [vmem:[#allocation2 + $0x2c] sm:$0xf]
    %v1518 = vld [vmem:[#allocation2 + $0x30] sm:$0xf]
    %v1519 = vld [vmem:[#allocation2 + $0x34] sm:$0xf]
    %v1520 = vld [vmem:[#allocation2 + $0x38] sm:$0xf]
    %v1521 = vld [vmem:[#allocation2 + $0x3c] sm:$0xf]
    %v1522 = vld [vmem:[#allocation2 + $0x40] sm:$0xf]
    %v1523 = vld [vmem:[#allocation2 + $0x44] sm:$0xf]
    %v1524 = vld [vmem:[#allocation2 + $0x48] sm:$0xf]
    %v1525 = vld [vmem:[#allocation2 + $0x4c] sm:$0xf]
    %v1526 = vld [vmem:[#allocation2 + $0x50] sm:$0xf]
    %v1527 = vld [vmem:[#allocation2 + $0x54] sm:$0xf]
    %v1528 = vld [vmem:[#allocation2 + $0x58] sm:$0xf]
    %v1529 = vld [vmem:[#allocation2 + $0x5c] sm:$0xf]
    %v1530 = vld [vmem:[#allocation2 + $0x60] sm:$0xf]
    %v1531 = vld [vmem:[#allocation2 + $0x64] sm:$0xf]
    %v1532 = vld [vmem:[#allocation2 + $0x68] sm:$0xf]
    %v1533 = vld [vmem:[#allocation2 + $0x6c] sm:$0xf]
    %v1534 = vld [vmem:[#allocation2 + $0x70] sm:$0xf]
    %v1535 = vld [vmem:[#allocation2 + $0x74] sm:$0xf]
    %v1536 = vld [vmem:[#allocation2 + $0x78] sm:$0xf]
    %v1537 = vld [vmem:[#allocation2 + $0x7c] sm:$0xf]
    %v1538 = vld [vmem:[#allocation2 + $0x80] sm:$0xf]
    %v1539 = vld [vmem:[#allocation2 + $0x84] sm:$0xf]
    %v1540 = vld [vmem:[#allocation2 + $0x88] sm:$0xf]
    %v1541 = vld [vmem:[#allocation2 + $0x8c] sm:$0xf]
    %v1542 = vld [vmem:[#allocation2 + $0x90] sm:$0xf]
    %v1543 = vld [vmem:[#allocation2 + $0x94] sm:$0xf]
    %v1544 = vld [vmem:[#allocation2 + $0x98] sm:$0xf]
    %v1545 = vld [vmem:[#allocation2 + $0x9c] sm:$0xf]
    %v1562 = vunpack.c.l.b16 %v1490
    %v1563 = vunpack.c.h.b16 %v1490
    %v1564 = vunpack.c.l.b16 %v1491
    %v1565 = vunpack.c.l.b16 %v1492
    %v1566 = vunpack.c.h.b16 %v1492
    %v1567 = vunpack.c.l.b16 %v1493
    %v1568 = vunpack.c.l.b16 %v1494
    %v1569 = vunpack.c.h.b16 %v1494
    %v1570 = vunpack.c.l.b16 %v1495
    %v1571 = vunpack.c.l.b16 %v1496
    %v1572 = vunpack.c.h.b16 %v1496
    %v1573 = vunpack.c.l.b16 %v1497
    %v1574 = vunpack.c.l.b16 %v1498
    %v1575 = vunpack.c.h.b16 %v1498
    %v1576 = vunpack.c.l.b16 %v1499
    %v1577 = vunpack.c.l.b16 %v1500
    %v1578 = vunpack.c.h.b16 %v1500
    %v1579 = vunpack.c.l.b16 %v1501
    %v1580 = vunpack.c.l.b16 %v1502
    %v1581 = vunpack.c.h.b16 %v1502
    %v1582 = vunpack.c.l.b16 %v1503
    %v1583 = vunpack.c.l.b16 %v1504
    %v1584 = vunpack.c.h.b16 %v1504
    %v1585 = vunpack.c.l.b16 %v1505
    %v1586 = vpack.c.b16 %v1565, %v1562
    %v1587 = vpack.c.b16 %v1566, %v1563
    %v1588 = vpack.c.b16 %v1567, %v1564
    %v1589 = vpack.c.b16 %v1571, %v1568
    %v1590 = vpack.c.b16 %v1572, %v1569
    %v1591 = vpack.c.b16 %v1573, %v1570
    %v1592 = vpack.c.b16 %v1577, %v1574
    %v1593 = vpack.c.b16 %v1578, %v1575
    %v1594 = vpack.c.b16 %v1579, %v1576
    %v1595 = vpack.c.b16 %v1583, %v1580
    %v1596 = vpack.c.b16 %v1584, %v1581
    %v1597 = vpack.c.b16 %v1585, %v1582
    %v1646 = vunpack.c.l.b16 %v1506
    %v1647 = vunpack.c.l.b16 %v1507
    %v1648 = vunpack.c.l.b16 %v1508
    %v1649 = vunpack.c.l.b16 %v1509
    %v1650 = vunpack.c.l.b16 %v1510
    %v1651 = vunpack.c.l.b16 %v1511
    %v1652 = vunpack.c.l.b16 %v1512
    %v1653 = vunpack.c.l.b16 %v1513
    %v1654 = vunpack.c.l.b16 %v1514
    %v1655 = vunpack.c.l.b16 %v1515
    %v1656 = vunpack.c.l.b16 %v1516
    %v1657 = vunpack.c.l.b16 %v1517
    %v1658 = vunpack.c.l.b16 %v1518
    %v1659 = vunpack.c.l.b16 %v1519
    %v1660 = vunpack.c.l.b16 %v1520
    %v1661 = vunpack.c.l.b16 %v1521
    %v1662 = vunpack.c.l.b16 %v1522
    %v1663 = vunpack.c.l.b16 %v1523
    %v1664 = vunpack.c.l.b16 %v1524
    %v1665 = vunpack.c.l.b16 %v1525
    %v1666 = vunpack.c.l.b16 %v1526
    %v1667 = vunpack.c.l.b16 %v1527
    %v1668 = vunpack.c.l.b16 %v1528
    %v1669 = vunpack.c.l.b16 %v1529
    %v1670 = vunpack.c.l.b16 %v1530
    %v1671 = vunpack.c.l.b16 %v1531
    %v1672 = vunpack.c.l.b16 %v1532
    %v1673 = vunpack.c.l.b16 %v1533
    %v1674 = vunpack.c.l.b16 %v1534
    %v1675 = vunpack.c.l.b16 %v1535
    %v1676 = vunpack.c.l.b16 %v1536
    %v1677 = vunpack.c.l.b16 %v1537
    %v1678 = vunpack.c.l.b16 %v1538
    %v1679 = vunpack.c.l.b16 %v1539
    %v1680 = vunpack.c.l.b16 %v1540
    %v1681 = vunpack.c.l.b16 %v1541
    %v1682 = vunpack.c.l.b16 %v1542
    %v1683 = vunpack.c.l.b16 %v1543
    %v1684 = vunpack.c.l.b16 %v1544
    %v1685 = vunpack.c.l.b16 %v1545
    %v1686 = vpack.c.b16 %v1647, %v1646
    %v1687 = vpack.c.b16 %v1649, %v1648
    %v1688 = vpack.c.b16 %v1651, %v1650
    %v1689 = vpack.c.b16 %v1653, %v1652
    %v1690 = vpack.c.b16 %v1655, %v1654
    %v1691 = vpack.c.b16 %v1657, %v1656
    %v1692 = vpack.c.b16 %v1659, %v1658
    %v1693 = vpack.c.b16 %v1661, %v1660
    %v1694 = vpack.c.b16 %v1663, %v1662
    %v1695 = vpack.c.b16 %v1665, %v1664
    %v1696 = vpack.c.b16 %v1667, %v1666
    %v1697 = vpack.c.b16 %v1669, %v1668
    %v1698 = vpack.c.b16 %v1671, %v1670
    %v1699 = vpack.c.b16 %v1673, %v1672
    %v1700 = vpack.c.b16 %v1675, %v1674
    %v1701 = vpack.c.b16 %v1677, %v1676
    %v1702 = vpack.c.b16 %v1679, %v1678
    %v1703 = vpack.c.b16 %v1681, %v1680
    %v1704 = vpack.c.b16 %v1683, %v1682
    %v1705 = vpack.c.b16 %v1685, %v1684
    %v1727 = vsel %vm528, %v1588, 0
    %v1730 = vsel %vm528, %v1591, 0
    %v1733 = vsel %vm528, %v1594, 0
    %v1736 = vsel %vm528, %v1597, 0
    %1738 = vmatprep.subr.bf16.mxu0 0
    %1739 = vmatpush1.bf16.msra.mxu0 %v1693
    %1740 = vmatprep.subr.bf16.mxu0 0
    %1741 = vmatpush1.bf16.msra.mxu0 %v1692
    %1742 = vmatprep.subr.bf16.mxu0 0
    %1743 = vmatpush1.bf16.msra.mxu0 %v1691
    %1744 = vmatprep.subr.bf16.mxu0 0
    %1745 = vmatpush1.bf16.msra.mxu0 %v1690
    %1746 = vmatprep.subr.bf16.mxu0 0
    %1747 = vmatpush1.bf16.msra.mxu0 %v1689
    %1748 = vmatprep.subr.bf16.mxu0 0
    %1749 = vmatpush1.bf16.msra.mxu0 %v1688
    %1750 = vmatprep.subr.bf16.mxu0 0
    %1751 = vmatpush1.bf16.msra.mxu0 %v1687
    %1752 = vmatprep.subr.bf16.mxu0 0
    %1753 = vmatpush1.bf16.msra.mxu0 %v1686
    %1754 = vmatprep.subr.bf16.mxu0 0
    %1755 = vmatpush2.bf16.msra.mxu0 %v1701
    %1756 = vmatprep.subr.bf16.mxu0 0
    %1757 = vmatpush2.bf16.msra.mxu0 %v1700
    %1758 = vmatprep.subr.bf16.mxu0 0
    %1759 = vmatpush2.bf16.msra.mxu0 %v1699
    %1760 = vmatprep.subr.bf16.mxu0 0
    %1761 = vmatpush2.bf16.msra.mxu0 %v1698
    %1762 = vmatprep.subr.bf16.mxu0 0
    %1763 = vmatpush2.bf16.msra.mxu0 %v1697
    %1764 = vmatprep.subr.bf16.mxu0 0
    %1765 = vmatpush2.bf16.msra.mxu0 %v1696
    %1766 = vmatprep.subr.bf16.mxu0 0
    %1767 = vmatpush2.bf16.msra.mxu0 %v1695
    %1768 = vmatprep.subr.bf16.mxu0 0
    %1769 = vmatpush2.bf16.msra.mxu0 %v1694
    %1770 = vmatprep.mubr.bf16.mxu0 %v1587
    %1771 = vmatmul.mubr.bf16.gmra.mxu0 %v1586
    %v1772 = vpop.f32.mrf.mxu0
    %v1773 = vadd.f32 0.0, %v1772
    %v1774 = vpop.f32.mrf.mxu0
    %v1775 = vpop.f32.mrf.mxu0
    %v1776 = vadd.f32 0.0, %v1775
    %v1777 = vpop.f32.mrf.mxu0
    %1778 = vmatprep.mubr.bf16.mxu0 %v1590
    %1779 = vmatmul.mubr.bf16.gmra.mxu0 %v1589
    %v1780 = vpop.f32.mrf.mxu0
    %v1781 = vadd.f32 0.0, %v1780
    %v1782 = vpop.f32.mrf.mxu0
    %v1783 = vpop.f32.mrf.mxu0
    %v1784 = vadd.f32 0.0, %v1783
    %v1785 = vpop.f32.mrf.mxu0
    %1786 = vmatprep.mubr.bf16.mxu0 %v1593
    %1787 = vmatmul.mubr.bf16.gmra.mxu0 %v1592
    %v1788 = vpop.f32.mrf.mxu0
    %v1789 = vadd.f32 0.0, %v1788
    %v1790 = vpop.f32.mrf.mxu0
    %v1791 = vpop.f32.mrf.mxu0
    %v1792 = vadd.f32 0.0, %v1791
    %v1793 = vpop.f32.mrf.mxu0
    %1794 = vmatprep.mubr.bf16.mxu0 %v1596
    %1795 = vmatmul.mubr.bf16.gmra.mxu0 %v1595
    %v1796 = vpop.f32.mrf.mxu0
    %v1797 = vadd.f32 0.0, %v1796
    %v1798 = vpop.f32.mrf.mxu0
    %v1799 = vpop.f32.mrf.mxu0
    %v1800 = vadd.f32 0.0, %v1799
    %v1801 = vpop.f32.mrf.mxu0
    %1802 = vdwg.mxu0
    %1803 = vmatprep.subr.bf16.mxu0 0
    %1804 = vmatpush1.bf16.msra.mxu0 0
    %1805 = vmatprep.subr.bf16.mxu0 0
    %1806 = vmatpush1.bf16.msra.mxu0 0
    %1807 = vmatprep.subr.bf16.mxu0 0
    %1808 = vmatpush1.bf16.msra.mxu0 0
    %1809 = vmatprep.subr.bf16.mxu0 0
    %1810 = vmatpush1.bf16.msra.mxu0 0
    %1811 = vmatprep.subr.bf16.mxu0 0
    %1812 = vmatpush1.bf16.msra.mxu0 %v1705
    %1813 = vmatprep.subr.bf16.mxu0 0
    %1814 = vmatpush1.bf16.msra.mxu0 %v1704
    %1815 = vmatprep.subr.bf16.mxu0 0
    %1816 = vmatpush1.bf16.msra.mxu0 %v1703
    %1817 = vmatprep.subr.bf16.mxu0 0
    %1818 = vmatpush1.bf16.msra.mxu0 %v1702
    %1819 = vmatprep.subr.bf16.mxu0 0
    %1820 = vmatpush2.bf16.msra.mxu0 0
    %1821 = vmatprep.subr.bf16.mxu0 0
    %1822 = vmatpush2.bf16.msra.mxu0 0
    %1823 = vmatprep.subr.bf16.mxu0 0
    %1824 = vmatpush2.bf16.msra.mxu0 0
    %1825 = vmatprep.subr.bf16.mxu0 0
    %1826 = vmatpush2.bf16.msra.mxu0 0
    %1827 = vmatprep.subr.bf16.mxu0 0
    %1828 = vmatpush2.bf16.msra.mxu0 0
    %1829 = vmatprep.subr.bf16.mxu0 0
    %1830 = vmatpush2.bf16.msra.mxu0 0
    %1831 = vmatprep.subr.bf16.mxu0 0
    %1832 = vmatpush2.bf16.msra.mxu0 0
    %1833 = vmatprep.subr.bf16.mxu0 0
    %1834 = vmatpush2.bf16.msra.mxu0 0
    %1835 = vmatprep.mubr.bf16.mxu0 0
    %1836 = vmatmul.mubr.bf16.gmra.mxu0 %v1727
    %v1837 = vpop.f32.mrf.mxu0
    %v1838 = vadd.f32 %v1773, %v1837
    %v1839 = vpop.f32.mrf.mxu0
    %v1840 = vpop.f32.mrf.mxu0
    %v1841 = vadd.f32 %v1776, %v1840
    %v1842 = vpop.f32.mrf.mxu0
    %1843 = vmatprep.mubr.bf16.mxu0 0
    %1844 = vmatmul.mubr.bf16.gmra.mxu0 %v1730
    %v1845 = vpop.f32.mrf.mxu0
    %v1846 = vadd.f32 %v1781, %v1845
    %v1847 = vpop.f32.mrf.mxu0
    %v1848 = vpop.f32.mrf.mxu0
    %v1849 = vadd.f32 %v1784, %v1848
    %v1850 = vpop.f32.mrf.mxu0
    %1851 = vmatprep.mubr.bf16.mxu0 0
    %1852 = vmatmul.mubr.bf16.gmra.mxu0 %v1733
    %v1853 = vpop.f32.mrf.mxu0
    %v1854 = vadd.f32 %v1789, %v1853
    %v1855 = vpop.f32.mrf.mxu0
    %v1856 = vpop.f32.mrf.mxu0
    %v1857 = vadd.f32 %v1792, %v1856
    %v1858 = vpop.f32.mrf.mxu0
    %1859 = vmatprep.mubr.bf16.mxu0 0
    %1860 = vmatmul.mubr.bf16.gmra.mxu0 %v1736
    %v1861 = vpop.f32.mrf.mxu0
    %v1862 = vadd.f32 %v1797, %v1861
    %v1863 = vpop.f32.mrf.mxu0
    %v1864 = vpop.f32.mrf.mxu0
    %v1865 = vadd.f32 %v1800, %v1864
    %v1866 = vpop.f32.mrf.mxu0
    %1867 = vdwg.mxu0
    %v1868 = vadd.f32 %v1452, %v1838
    %v1869 = vadd.f32 %v1457, %v1841
    %v1870 = vadd.f32 %v1462, %v1846
    %v1871 = vadd.f32 %v1467, %v1849
    %v1872 = vadd.f32 %v1472, %v1854
    %v1873 = vadd.f32 %v1477, %v1857
    %v1874 = vadd.f32 %v1482, %v1862
    %v1875 = vadd.f32 %v1487, %v1865
    %v1876 = vsel %vm528, %v1868, -inf
    %1877 = vmax.xlane.f32.xlu0 %v1876
    %v1878 = vpop.xlane.xlu0 %1877
    %v1879 = vsel %vm528, %v1869, -inf
    %1880 = vmax.xlane.f32.xlu0 %v1879
    %v1881 = vpop.xlane.xlu0 %1880
    %v1882 = vsel %vm528, %v1870, -inf
    %1883 = vmax.xlane.f32.xlu0 %v1882
    %v1884 = vpop.xlane.xlu0 %1883
    %v1885 = vsel %vm528, %v1871, -inf
    %1886 = vmax.xlane.f32.xlu0 %v1885
    %v1887 = vpop.xlane.xlu0 %1886
    %v1888 = vsel %vm528, %v1872, -inf
    %1889 = vmax.xlane.f32.xlu0 %v1888
    %v1890 = vpop.xlane.xlu0 %1889
    %v1891 = vsel %vm528, %v1873, -inf
    %1892 = vmax.xlane.f32.xlu0 %v1891
    %v1893 = vpop.xlane.xlu0 %1892
    %v1894 = vsel %vm528, %v1874, -inf
    %1895 = vmax.xlane.f32.xlu0 %v1894
    %v1896 = vpop.xlane.xlu0 %1895
    %v1897 = vsel %vm528, %v1875, -inf
    %1898 = vmax.xlane.f32.xlu0 %v1897
    %v1899 = vpop.xlane.xlu0 %1898
    %v1900 = vsub.f32 %v1868, %v1878
    %v1901 = vsub.f32 %v1869, %v1881
    %v1902 = vsub.f32 %v1870, %v1884
    %v1903 = vsub.f32 %v1871, %v1887
    %v1904 = vsub.f32 %v1872, %v1890
    %v1905 = vsub.f32 %v1873, %v1893
    %v1906 = vsub.f32 %v1874, %v1896
    %v1907 = vsub.f32 %v1875, %v1899
    %v1908 = vmul.f32 %v1900, 1.442695
    %v1909 = vpow.pop %v1908
    %v1910 = vmul.f32 %v1901, 1.442695
    %v1911 = vpow.pop %v1910
    %v1912 = vmul.f32 %v1902, 1.442695
    %v1913 = vpow.pop %v1912
    %v1914 = vmul.f32 %v1903, 1.442695
    %v1915 = vpow.pop %v1914
    %v1916 = vmul.f32 %v1904, 1.442695
    %v1917 = vpow.pop %v1916
    %v1918 = vmul.f32 %v1905, 1.442695
    %v1919 = vpow.pop %v1918
    %v1920 = vmul.f32 %v1906, 1.442695
    %v1921 = vpow.pop %v1920
    %v1922 = vmul.f32 %v1907, 1.442695
    %v1923 = vpow.pop %v1922
    %v1924 = vsel %vm528, %v1909, 0.0
    %1925 = vadd.xlane.f32.xlu0 %v1924
    %v1926 = vpop.xlane.xlu0 %1925
    %v1927 = vsel %vm528, %v1911, 0.0
    %1928 = vadd.xlane.f32.xlu0 %v1927
    %v1929 = vpop.xlane.xlu0 %1928
    %v1930 = vsel %vm528, %v1913, 0.0
    %1931 = vadd.xlane.f32.xlu0 %v1930
    %v1932 = vpop.xlane.xlu0 %1931
    %v1933 = vsel %vm528, %v1915, 0.0
    %1934 = vadd.xlane.f32.xlu0 %v1933
    %v1935 = vpop.xlane.xlu0 %1934
    %v1936 = vsel %vm528, %v1917, 0.0
    %1937 = vadd.xlane.f32.xlu0 %v1936
    %v1938 = vpop.xlane.xlu0 %1937
    %v1939 = vsel %vm528, %v1919, 0.0
    %1940 = vadd.xlane.f32.xlu0 %v1939
    %v1941 = vpop.xlane.xlu0 %1940
    %v1942 = vsel %vm528, %v1921, 0.0
    %1943 = vadd.xlane.f32.xlu0 %v1942
    %v1944 = vpop.xlane.xlu0 %1943
    %v1945 = vsel %vm528, %v1923, 0.0
    %1946 = vadd.xlane.f32.xlu0 %v1945
    %v1947 = vpop.xlane.xlu0 %1946
    %v1948 = vlog2.pop %v1926
    %v1949 = vmul.f32 %v1948, 0.6931472
    %v1950 = vlog2.pop %v1929
    %v1951 = vmul.f32 %v1950, 0.6931472
    %v1952 = vlog2.pop %v1932
    %v1953 = vmul.f32 %v1952, 0.6931472
    %v1954 = vlog2.pop %v1935
    %v1955 = vmul.f32 %v1954, 0.6931472
    %v1956 = vlog2.pop %v1938
    %v1957 = vmul.f32 %v1956, 0.6931472
    %v1958 = vlog2.pop %v1941
    %v1959 = vmul.f32 %v1958, 0.6931472
    %v1960 = vlog2.pop %v1944
    %v1961 = vmul.f32 %v1960, 0.6931472
    %v1962 = vlog2.pop %v1947
    %v1963 = vmul.f32 %v1962, 0.6931472
    %v1964 = vsub.f32 %v1900, %v1949
    %v1965 = vsub.f32 %v1901, %v1951
    %v1966 = vsub.f32 %v1902, %v1953
    %v1967 = vsub.f32 %v1903, %v1955
    %v1968 = vsub.f32 %v1904, %v1957
    %v1969 = vsub.f32 %v1905, %v1959
    %v1970 = vsub.f32 %v1906, %v1961
    %v1971 = vsub.f32 %v1907, %v1963
    %1972 = vst.msk [vmem:[#allocation3] sm:$0xff] %vm528, %v1964
    %1973 = vst.msk [vmem:[#allocation3 + $0x8] sm:$0xff] %vm528, %v1965
    %1974 = vst.msk [vmem:[#allocation3 + $0x10] sm:$0xff] %vm528, %v1966
    %1975 = vst.msk [vmem:[#allocation3 + $0x18] sm:$0xff] %vm528, %v1967
    %1976 = vst.msk [vmem:[#allocation3 + $0x20] sm:$0xff] %vm528, %v1968
    %1977 = vst.msk [vmem:[#allocation3 + $0x28] sm:$0xff] %vm528, %v1969
    %1978 = vst.msk [vmem:[#allocation3 + $0x30] sm:$0xff] %vm528, %v1970
    %1979 = vst.msk [vmem:[#allocation3 + $0x38] sm:$0xff] %vm528, %v1971
    // Predicated region
    $region38: #{spline_cnn_forward.1} parent=1 // pred_check
      _
    $region39: #{spline_cnn_forward.1} parent=1 // pred_check_branch
      %1981 = sbr.rel (0) target = $region41
    $region40: #{spline_cnn_forward.1} parent=1 // pred_region
      %s1983 = ssub.s32 1024, 1024
      %1984 = vsyncadd [#allocation4], %s1983
      %s1985 = sshll.u32 [#allocation3], 4
      %s1986 = int_to_ptr.vmem [resolvable:$true] %s1985
      %1991 = dma.vmem_to_hbm [thread:$0]  %s1986, 1024, %s9, [#allocation4], 128, 128, 8
    $region41: #{spline_cnn_forward.1} parent=1 // pred_fallthru
      _
    // Predicated region
    $region42: #{spline_cnn_forward.1} parent=1 // pred_check
      _
    $region43: #{spline_cnn_forward.1} parent=1 // pred_check_branch
      %1993 = sbr.rel (0) target = $region45
    $region44: #{spline_cnn_forward.1} parent=1 // pred_region
      %1994 = dma.done [#allocation4], 1024
    $region45: #{spline_cnn_forward.1} parent=1 // pred_fallthru
      _
    %1995 = vsyncpa [#allocation4], 1

</llo_original>
